<compile_context>
chip_gen: v7x
topology: tpu7x:2x2x1
jax: 0.10.0
libtpu: 0.0.40
codegen_flags: <defaults>
</compile_context>

<pallas_src>
import functools

import numpy as np
import jax
import jax.numpy as jnp
from jax import lax
from jax.experimental import pallas as pl
from jax.experimental.pallas import tpu as pltpu


# ----------------------------------------------------------------------------
# Fused kernel
# ----------------------------------------------------------------------------
def classifier_kernel(x_ref, masks_ref,
                      dw1_ref, s1a_ref, b1a_ref, pw1_ref, s1b_ref, b1b_ref,
                      dw2_ref, s2a_ref, b2a_ref, pw2_ref, s2b_ref, b2b_ref,
                      wf_ref, bf_ref, o_ref, *, W):
    """Fused Classifer forward for one batch element.

    x_ref     : (1, C, H*W)  VMEM  -- input, spatial dims flattened onto lanes
    masks_ref : (9, H*W)     VMEM  -- 0/1 validity mask per 3x3 tap (edge halo)
    dw*_ref   : (C, 9)       VMEM  -- depthwise 3x3 weights, taps on last axis
    s*_/b*_   : (C, 1)       VMEM  -- folded BatchNorm scale / bias
    pw*_ref   : (C, C)       VMEM  -- pointwise 1x1 weights (c_out, c_in)
    wf_ref    : (NC, C)      VMEM  -- head 1x1 weights;  bf_ref : (NC, 1) bias
    o_ref     : (1, NC, H*W) VMEM
    """
    C = x_ref.shape[1]
    NC = o_ref.shape[1]
    HW = x_ref.shape[2]

    masks = masks_ref[...]                      # (9, HW), loaded once

    def depthwise_bn_relu(x, dw, s, b):
        # 3x3 depthwise conv (stride 1, pad 1, groups=C) on the flattened
        # spatial axis: each tap is a lane rotation + edge mask; all channels
        # are processed together on dense (C, HW) tiles.
        acc = jnp.zeros((C, HW), jnp.float32)
        for dy in range(3):
            for dx in range(3):
                t = dy * 3 + dx
                off = (dy - 1) * W + (dx - 1)   # tap offset in flattened space
                if off == 0:
                    tap = x
                else:
                    tap = pltpu.roll(x, shift=(-off) % HW, axis=1)
                    tap = tap * masks[t:t + 1, :]          # zero the halo
                acc = acc + tap * dw[:, t:t + 1]           # per-channel weight
        return jnp.maximum(acc * s + b, 0.0)               # folded BN + ReLU

    def pointwise(y, w, c_out):
        # 1x1 conv: out[co] = sum_ci w[co, ci] * y[ci]; dense (c_out, HW) tiles.
        acc = jnp.zeros((c_out, HW), jnp.float32)
        for ci in range(C):
            acc = acc + y[ci:ci + 1, :] * w[:, ci:ci + 1]
        return acc

    x = x_ref[0]                                            # (C, HW)

    # DSConv block 1
    h = depthwise_bn_relu(x, dw1_ref[...], s1a_ref[...], b1a_ref[...])
    h = jnp.maximum(pointwise(h, pw1_ref[...], C) * s1b_ref[...] + b1b_ref[...], 0.0)
    # DSConv block 2
    h = depthwise_bn_relu(h, dw2_ref[...], s2a_ref[...], b2a_ref[...])
    h = jnp.maximum(pointwise(h, pw2_ref[...], C) * s2b_ref[...] + b2b_ref[...], 0.0)
    # nn.Dropout(0.1) is the identity at inference; 1x1 conv head with bias.
    o_ref[0] = pointwise(h, wf_ref[...], NC) + bf_ref[...]


# ----------------------------------------------------------------------------
# Wrapper
# ----------------------------------------------------------------------------
def _tap_masks(H, W):
    """0/1 validity masks (9, H*W) for the 3x3 taps on the flattened layout."""
    row = np.arange(H * W) // W
    col = np.arange(H * W) % W
    m = np.zeros((9, H * W), np.float32)
    for dy in range(3):
        for dx in range(3):
            ok = ((row + dy - 1 >= 0) & (row + dy - 1 < H) &
                  (col + dx - 1 >= 0) & (col + dx - 1 < W))
            m[dy * 3 + dx] = ok.astype(np.float32)
    return jnp.asarray(m)


def classifier_forward(x, p, num_classes):
    B, C, H, W = x.shape
    HW = H * W
    NC = num_classes

    colv = lambda v: v.reshape(-1, 1)
    weights = (
        _tap_masks(H, W),
        p["dw1"].reshape(C, 9), colv(p["s1a"]), colv(p["b1a"]),
        p["pw1"], colv(p["s1b"]), colv(p["b1b"]),
        p["dw2"].reshape(C, 9), colv(p["s2a"]), colv(p["b2a"]),
        p["pw2"], colv(p["s2b"]), colv(p["b2b"]),
        p["wf"], colv(p["bf"]),
    )

    def wspec(a):  # whole (tiny) array resident in VMEM, same block every step
        return pl.BlockSpec(a.shape, lambda b, nd=a.ndim: (0,) * nd)

    out = pl.pallas_call(
        functools.partial(classifier_kernel, W=W),
        out_shape=jax.ShapeDtypeStruct((B, NC, HW), jnp.float32),
        grid=(B,),
        in_specs=[pl.BlockSpec((1, C, HW), lambda b: (b, 0, 0))]
                 + [wspec(a) for a in weights],
        out_specs=pl.BlockSpec((1, NC, HW), lambda b: (b, 0, 0)),
        compiler_params=pltpu.CompilerParams(dimension_semantics=("parallel",)),
    )(x.reshape(B, C, HW), *weights)
    return out.reshape(B, NC, H, W)


# ----------------------------------------------------------------------------
# Pure-JAX reference (eval-mode semantics) for validation
# ----------------------------------------------------------------------------
def _ref_dsconv(x, dw, sa, ba, pw, sb, bb):
    C = x.shape[1]
    y = lax.conv_general_dilated(
        x, dw.reshape(C, 1, 3, 3), window_strides=(1, 1),
        padding=((1, 1), (1, 1)), feature_group_count=C,
        dimension_numbers=("NCHW", "OIHW", "NCHW"))
    y = jnp.maximum(y * sa[None, :, None, None] + ba[None, :, None, None], 0.0)
    y = lax.conv_general_dilated(
        y, pw.reshape(C, C, 1, 1), window_strides=(1, 1), padding="VALID",
        dimension_numbers=("NCHW", "OIHW", "NCHW"))
    y = jnp.maximum(y * sb[None, :, None, None] + bb[None, :, None, None], 0.0)
    return y


def ref_forward(x, p, num_classes):
    C = x.shape[1]
    h = _ref_dsconv(x, p["dw1"], p["s1a"], p["b1a"], p["pw1"], p["s1b"], p["b1b"])
    h = _ref_dsconv(h, p["dw2"], p["s2a"], p["b2a"], p["pw2"], p["s2b"], p["b2b"])
    o = lax.conv_general_dilated(
        h, p["wf"].reshape(num_classes, C, 1, 1), window_strides=(1, 1),
        padding="VALID", dimension_numbers=("NCHW", "OIHW", "NCHW"))
    return o + p["bf"][None, :, None, None]


# ----------------------------------------------------------------------------
# Deterministic parameter construction (eval-mode BN folded to scale/bias)
# ----------------------------------------------------------------------------
def _bn_fold(kg, kb, km, kv, C, eps=1e-5):
    gamma = 1.0 + 0.1 * jax.random.normal(kg, (C,), jnp.float32)
    beta = 0.1 * jax.random.normal(kb, (C,), jnp.float32)
    mean = 0.1 * jax.random.normal(km, (C,), jnp.float32)
    var = 0.5 + jax.random.uniform(kv, (C,), jnp.float32)
    scale = gamma / jnp.sqrt(var + eps)
    bias = beta - mean * scale
    return scale, bias


def make_params(key, C, num_classes):
    ks = jax.random.split(key, 24)
    p = {}
    p["dw1"] = 0.2 * jax.random.normal(ks[0], (C, 3, 3), jnp.float32)
    p["s1a"], p["b1a"] = _bn_fold(ks[1], ks[2], ks[3], ks[4], C)
    p["pw1"] = 0.3 * jax.random.normal(ks[5], (C, C), jnp.float32)
    p["s1b"], p["b1b"] = _bn_fold(ks[6], ks[7], ks[8], ks[9], C)
    p["dw2"] = 0.2 * jax.random.normal(ks[10], (C, 3, 3), jnp.float32)
    p["s2a"], p["b2a"] = _bn_fold(ks[11], ks[12], ks[13], ks[14], C)
    p["pw2"] = 0.3 * jax.random.normal(ks[15], (C, C), jnp.float32)
    p["s2b"], p["b2b"] = _bn_fold(ks[16], ks[17], ks[18], ks[19], C)
    p["wf"] = 0.3 * jax.random.normal(ks[20], (num_classes, C), jnp.float32)
    p["bf"] = 0.1 * jax.random.normal(ks[21], (num_classes,), jnp.float32)
    return p


# ----------------------------------------------------------------------------
if __name__ == "__main__":
    B, C, H, W = 2, 4, 16, 16         # dw_channels = 4
    NUM_CLASSES = 8

    key = jax.random.PRNGKey(0)
    kx, kp = jax.random.split(key)
    x = jax.random.normal(kx, (B, C, H, W), jnp.float32)
    params = make_params(kp, C, NUM_CLASSES)

    fwd = jax.jit(classifier_forward, static_argnums=(2,))
    out = jax.block_until_ready(fwd(x, params, NUM_CLASSES))
    assert out.shape == (B, NUM_CLASSES, H, W), out.shape

    ref = ref_forward(x, params, NUM_CLASSES)
    max_err = float(jnp.max(jnp.abs(out - ref)))
    if not (max_err < 1e-3):
        raise RuntimeError(f"Pallas output mismatch vs reference, max_err={max_err}")

    print("KERNEL_OK")
</pallas_src>

<mosaic_0001>
module attributes {stable_mosaic.version = 11 : i64} {
  func.func @classifier_kernel(%arg0: i32, %arg1: memref<1x4x256xf32, #tpu.memory_space<vmem>>, %arg2: memref<9x256xf32, #tpu.memory_space<vmem>>, %arg3: memref<4x9xf32, #tpu.memory_space<vmem>>, %arg4: memref<4x1xf32, #tpu.memory_space<vmem>>, %arg5: memref<4x1xf32, #tpu.memory_space<vmem>>, %arg6: memref<4x4xf32, #tpu.memory_space<vmem>>, %arg7: memref<4x1xf32, #tpu.memory_space<vmem>>, %arg8: memref<4x1xf32, #tpu.memory_space<vmem>>, %arg9: memref<4x9xf32, #tpu.memory_space<vmem>>, %arg10: memref<4x1xf32, #tpu.memory_space<vmem>>, %arg11: memref<4x1xf32, #tpu.memory_space<vmem>>, %arg12: memref<4x4xf32, #tpu.memory_space<vmem>>, %arg13: memref<4x1xf32, #tpu.memory_space<vmem>>, %arg14: memref<4x1xf32, #tpu.memory_space<vmem>>, %arg15: memref<8x4xf32, #tpu.memory_space<vmem>>, %arg16: memref<8x1xf32, #tpu.memory_space<vmem>>, %arg17: memref<1x8x256xf32, #tpu.memory_space<vmem>>) attributes {dimension_semantics = [#tpu.dimension_semantics<parallel>], iteration_bounds = array<i64: 2>, scalar_prefetch = 0 : i64, scratch_operands = 0 : i64, tpu.core_type = #tpu.core_type<tc>, window_params = [{transform_indices = @transform_0, window_bounds = array<i64: 1, 4, 256>}, {pipeline_mode = #tpu.pipeline_mode<synchronous>, transform_indices = @transform_1, window_bounds = array<i64: 9, 256>}, {pipeline_mode = #tpu.pipeline_mode<synchronous>, transform_indices = @transform_2, window_bounds = array<i64: 4, 9>}, {pipeline_mode = #tpu.pipeline_mode<synchronous>, transform_indices = @transform_3, window_bounds = array<i64: 4, 1>}, {pipeline_mode = #tpu.pipeline_mode<synchronous>, transform_indices = @transform_4, window_bounds = array<i64: 4, 1>}, {pipeline_mode = #tpu.pipeline_mode<synchronous>, transform_indices = @transform_5, window_bounds = array<i64: 4, 4>}, {pipeline_mode = #tpu.pipeline_mode<synchronous>, transform_indices = @transform_6, window_bounds = array<i64: 4, 1>}, {pipeline_mode = #tpu.pipeline_mode<synchronous>, transform_indices = @transform_7, window_bounds = array<i64: 4, 1>}, {pipeline_mode = #tpu.pipeline_mode<synchronous>, transform_indices = @transform_8, window_bounds = array<i64: 4, 9>}, {pipeline_mode = #tpu.pipeline_mode<synchronous>, transform_indices = @transform_9, window_bounds = array<i64: 4, 1>}, {pipeline_mode = #tpu.pipeline_mode<synchronous>, transform_indices = @transform_10, window_bounds = array<i64: 4, 1>}, {pipeline_mode = #tpu.pipeline_mode<synchronous>, transform_indices = @transform_11, window_bounds = array<i64: 4, 4>}, {pipeline_mode = #tpu.pipeline_mode<synchronous>, transform_indices = @transform_12, window_bounds = array<i64: 4, 1>}, {pipeline_mode = #tpu.pipeline_mode<synchronous>, transform_indices = @transform_13, window_bounds = array<i64: 4, 1>}, {pipeline_mode = #tpu.pipeline_mode<synchronous>, transform_indices = @transform_14, window_bounds = array<i64: 8, 4>}, {pipeline_mode = #tpu.pipeline_mode<synchronous>, transform_indices = @transform_15, window_bounds = array<i64: 8, 1>}, {transform_indices = @transform_16, window_bounds = array<i64: 1, 8, 256>}]} {
    %c0 = arith.constant 0 : index
    %c0_0 = arith.constant 0 : index
    %0 = vector.load %arg2[%c0, %c0_0] : memref<9x256xf32, #tpu.memory_space<vmem>>, vector<9x256xf32>
    %c0_1 = arith.constant 0 : index
    %c0_2 = arith.constant 0 : index
    %c0_3 = arith.constant 0 : index
    %1 = vector.load %arg1[%c0_1, %c0_2, %c0_3] : memref<1x4x256xf32, #tpu.memory_space<vmem>>, vector<1x4x256xf32>
    %2 = vector.shape_cast %1 : vector<1x4x256xf32> to vector<4x256xf32>
    %c0_4 = arith.constant 0 : index
    %c0_5 = arith.constant 0 : index
    %3 = vector.load %arg3[%c0_4, %c0_5] : memref<4x9xf32, #tpu.memory_space<vmem>>, vector<4x9xf32>
    %c0_6 = arith.constant 0 : index
    %c0_7 = arith.constant 0 : index
    %4 = vector.load %arg4[%c0_6, %c0_7] : memref<4x1xf32, #tpu.memory_space<vmem>>, vector<4x1xf32>
    %c0_8 = arith.constant 0 : index
    %c0_9 = arith.constant 0 : index
    %5 = vector.load %arg5[%c0_8, %c0_9] : memref<4x1xf32, #tpu.memory_space<vmem>>, vector<4x1xf32>
    %cst = arith.constant 0.000000e+00 : f32
    %6 = vector.broadcast %cst : f32 to vector<4x256xf32>
    %c17_i32 = arith.constant 17 : i32
    %7 = tpu.dynamic_rotate %2 by %c17_i32 dim 1 : vector<4x256xf32>, i32 -> vector<4x256xf32>
    %8 = vector.extract_strided_slice %0 {offsets = [0, 0], sizes = [1, 256], strides = [1, 1]} : vector<9x256xf32> to vector<1x256xf32>
    %9 = vector.broadcast %8 : vector<1x256xf32> to vector<4x256xf32>
    %10 = arith.mulf %7, %9 : vector<4x256xf32>
    %11 = vector.extract_strided_slice %3 {offsets = [0, 0], sizes = [4, 1], strides = [1, 1]} : vector<4x9xf32> to vector<4x1xf32>
    %12 = vector.broadcast %11 : vector<4x1xf32> to vector<4x256xf32>
    %13 = arith.mulf %10, %12 : vector<4x256xf32>
    %14 = arith.addf %6, %13 : vector<4x256xf32>
    %c16_i32 = arith.constant 16 : i32
    %15 = tpu.dynamic_rotate %2 by %c16_i32 dim 1 : vector<4x256xf32>, i32 -> vector<4x256xf32>
    %16 = vector.extract_strided_slice %0 {offsets = [1, 0], sizes = [1, 256], strides = [1, 1]} : vector<9x256xf32> to vector<1x256xf32>
    %17 = vector.broadcast %16 : vector<1x256xf32> to vector<4x256xf32>
    %18 = arith.mulf %15, %17 : vector<4x256xf32>
    %19 = vector.extract_strided_slice %3 {offsets = [0, 1], sizes = [4, 1], strides = [1, 1]} : vector<4x9xf32> to vector<4x1xf32>
    %20 = vector.broadcast %19 : vector<4x1xf32> to vector<4x256xf32>
    %21 = arith.mulf %18, %20 : vector<4x256xf32>
    %22 = arith.addf %14, %21 : vector<4x256xf32>
    %c15_i32 = arith.constant 15 : i32
    %23 = tpu.dynamic_rotate %2 by %c15_i32 dim 1 : vector<4x256xf32>, i32 -> vector<4x256xf32>
    %24 = vector.extract_strided_slice %0 {offsets = [2, 0], sizes = [1, 256], strides = [1, 1]} : vector<9x256xf32> to vector<1x256xf32>
    %25 = vector.broadcast %24 : vector<1x256xf32> to vector<4x256xf32>
    %26 = arith.mulf %23, %25 : vector<4x256xf32>
    %27 = vector.extract_strided_slice %3 {offsets = [0, 2], sizes = [4, 1], strides = [1, 1]} : vector<4x9xf32> to vector<4x1xf32>
    %28 = vector.broadcast %27 : vector<4x1xf32> to vector<4x256xf32>
    %29 = arith.mulf %26, %28 : vector<4x256xf32>
    %30 = arith.addf %22, %29 : vector<4x256xf32>
    %c1_i32 = arith.constant 1 : i32
    %31 = tpu.dynamic_rotate %2 by %c1_i32 dim 1 : vector<4x256xf32>, i32 -> vector<4x256xf32>
    %32 = vector.extract_strided_slice %0 {offsets = [3, 0], sizes = [1, 256], strides = [1, 1]} : vector<9x256xf32> to vector<1x256xf32>
    %33 = vector.broadcast %32 : vector<1x256xf32> to vector<4x256xf32>
    %34 = arith.mulf %31, %33 : vector<4x256xf32>
    %35 = vector.extract_strided_slice %3 {offsets = [0, 3], sizes = [4, 1], strides = [1, 1]} : vector<4x9xf32> to vector<4x1xf32>
    %36 = vector.broadcast %35 : vector<4x1xf32> to vector<4x256xf32>
    %37 = arith.mulf %34, %36 : vector<4x256xf32>
    %38 = arith.addf %30, %37 : vector<4x256xf32>
    %39 = vector.extract_strided_slice %3 {offsets = [0, 4], sizes = [4, 1], strides = [1, 1]} : vector<4x9xf32> to vector<4x1xf32>
    %40 = vector.broadcast %39 : vector<4x1xf32> to vector<4x256xf32>
    %41 = arith.mulf %2, %40 : vector<4x256xf32>
    %42 = arith.addf %38, %41 : vector<4x256xf32>
    %c255_i32 = arith.constant 255 : i32
    %43 = tpu.dynamic_rotate %2 by %c255_i32 dim 1 : vector<4x256xf32>, i32 -> vector<4x256xf32>
    %44 = vector.extract_strided_slice %0 {offsets = [5, 0], sizes = [1, 256], strides = [1, 1]} : vector<9x256xf32> to vector<1x256xf32>
    %45 = vector.broadcast %44 : vector<1x256xf32> to vector<4x256xf32>
    %46 = arith.mulf %43, %45 : vector<4x256xf32>
    %47 = vector.extract_strided_slice %3 {offsets = [0, 5], sizes = [4, 1], strides = [1, 1]} : vector<4x9xf32> to vector<4x1xf32>
    %48 = vector.broadcast %47 : vector<4x1xf32> to vector<4x256xf32>
    %49 = arith.mulf %46, %48 : vector<4x256xf32>
    %50 = arith.addf %42, %49 : vector<4x256xf32>
    %c241_i32 = arith.constant 241 : i32
    %51 = tpu.dynamic_rotate %2 by %c241_i32 dim 1 : vector<4x256xf32>, i32 -> vector<4x256xf32>
    %52 = vector.extract_strided_slice %0 {offsets = [6, 0], sizes = [1, 256], strides = [1, 1]} : vector<9x256xf32> to vector<1x256xf32>
    %53 = vector.broadcast %52 : vector<1x256xf32> to vector<4x256xf32>
    %54 = arith.mulf %51, %53 : vector<4x256xf32>
    %55 = vector.extract_strided_slice %3 {offsets = [0, 6], sizes = [4, 1], strides = [1, 1]} : vector<4x9xf32> to vector<4x1xf32>
    %56 = vector.broadcast %55 : vector<4x1xf32> to vector<4x256xf32>
    %57 = arith.mulf %54, %56 : vector<4x256xf32>
    %58 = arith.addf %50, %57 : vector<4x256xf32>
    %c240_i32 = arith.constant 240 : i32
    %59 = tpu.dynamic_rotate %2 by %c240_i32 dim 1 : vector<4x256xf32>, i32 -> vector<4x256xf32>
    %60 = vector.extract_strided_slice %0 {offsets = [7, 0], sizes = [1, 256], strides = [1, 1]} : vector<9x256xf32> to vector<1x256xf32>
    %61 = vector.broadcast %60 : vector<1x256xf32> to vector<4x256xf32>
    %62 = arith.mulf %59, %61 : vector<4x256xf32>
    %63 = vector.extract_strided_slice %3 {offsets = [0, 7], sizes = [4, 1], strides = [1, 1]} : vector<4x9xf32> to vector<4x1xf32>
    %64 = vector.broadcast %63 : vector<4x1xf32> to vector<4x256xf32>
    %65 = arith.mulf %62, %64 : vector<4x256xf32>
    %66 = arith.addf %58, %65 : vector<4x256xf32>
    %c239_i32 = arith.constant 239 : i32
    %67 = tpu.dynamic_rotate %2 by %c239_i32 dim 1 : vector<4x256xf32>, i32 -> vector<4x256xf32>
    %68 = vector.extract_strided_slice %0 {offsets = [8, 0], sizes = [1, 256], strides = [1, 1]} : vector<9x256xf32> to vector<1x256xf32>
    %69 = vector.broadcast %68 : vector<1x256xf32> to vector<4x256xf32>
    %70 = arith.mulf %67, %69 : vector<4x256xf32>
    %71 = vector.extract_strided_slice %3 {offsets = [0, 8], sizes = [4, 1], strides = [1, 1]} : vector<4x9xf32> to vector<4x1xf32>
    %72 = vector.broadcast %71 : vector<4x1xf32> to vector<4x256xf32>
    %73 = arith.mulf %70, %72 : vector<4x256xf32>
    %74 = arith.addf %66, %73 : vector<4x256xf32>
    %75 = vector.broadcast %4 : vector<4x1xf32> to vector<4x256xf32>
    %76 = arith.mulf %74, %75 : vector<4x256xf32>
    %77 = vector.broadcast %5 : vector<4x1xf32> to vector<4x256xf32>
    %78 = arith.addf %76, %77 : vector<4x256xf32>
    %cst_10 = arith.constant 0.000000e+00 : f32
    %79 = vector.broadcast %cst_10 : f32 to vector<4x256xf32>
    %80 = arith.maximumf %78, %79 : vector<4x256xf32>
    %c0_11 = arith.constant 0 : index
    %c0_12 = arith.constant 0 : index
    %81 = vector.load %arg6[%c0_11, %c0_12] : memref<4x4xf32, #tpu.memory_space<vmem>>, vector<4x4xf32>
    %cst_13 = arith.constant 0.000000e+00 : f32
    %82 = vector.broadcast %cst_13 : f32 to vector<4x256xf32>
    %83 = vector.extract_strided_slice %80 {offsets = [0, 0], sizes = [1, 256], strides = [1, 1]} : vector<4x256xf32> to vector<1x256xf32>
    %84 = vector.extract_strided_slice %81 {offsets = [0, 0], sizes = [4, 1], strides = [1, 1]} : vector<4x4xf32> to vector<4x1xf32>
    %85 = vector.broadcast %83 : vector<1x256xf32> to vector<4x256xf32>
    %86 = vector.broadcast %84 : vector<4x1xf32> to vector<4x256xf32>
    %87 = arith.mulf %85, %86 : vector<4x256xf32>
    %88 = arith.addf %82, %87 : vector<4x256xf32>
    %89 = vector.extract_strided_slice %80 {offsets = [1, 0], sizes = [1, 256], strides = [1, 1]} : vector<4x256xf32> to vector<1x256xf32>
    %90 = vector.extract_strided_slice %81 {offsets = [0, 1], sizes = [4, 1], strides = [1, 1]} : vector<4x4xf32> to vector<4x1xf32>
    %91 = vector.broadcast %89 : vector<1x256xf32> to vector<4x256xf32>
    %92 = vector.broadcast %90 : vector<4x1xf32> to vector<4x256xf32>
    %93 = arith.mulf %91, %92 : vector<4x256xf32>
    %94 = arith.addf %88, %93 : vector<4x256xf32>
    %95 = vector.extract_strided_slice %80 {offsets = [2, 0], sizes = [1, 256], strides = [1, 1]} : vector<4x256xf32> to vector<1x256xf32>
    %96 = vector.extract_strided_slice %81 {offsets = [0, 2], sizes = [4, 1], strides = [1, 1]} : vector<4x4xf32> to vector<4x1xf32>
    %97 = vector.broadcast %95 : vector<1x256xf32> to vector<4x256xf32>
    %98 = vector.broadcast %96 : vector<4x1xf32> to vector<4x256xf32>
    %99 = arith.mulf %97, %98 : vector<4x256xf32>
    %100 = arith.addf %94, %99 : vector<4x256xf32>
    %101 = vector.extract_strided_slice %80 {offsets = [3, 0], sizes = [1, 256], strides = [1, 1]} : vector<4x256xf32> to vector<1x256xf32>
    %102 = vector.extract_strided_slice %81 {offsets = [0, 3], sizes = [4, 1], strides = [1, 1]} : vector<4x4xf32> to vector<4x1xf32>
    %103 = vector.broadcast %101 : vector<1x256xf32> to vector<4x256xf32>
    %104 = vector.broadcast %102 : vector<4x1xf32> to vector<4x256xf32>
    %105 = arith.mulf %103, %104 : vector<4x256xf32>
    %106 = arith.addf %100, %105 : vector<4x256xf32>
    %c0_14 = arith.constant 0 : index
    %c0_15 = arith.constant 0 : index
    %107 = vector.load %arg7[%c0_14, %c0_15] : memref<4x1xf32, #tpu.memory_space<vmem>>, vector<4x1xf32>
    %108 = vector.broadcast %107 : vector<4x1xf32> to vector<4x256xf32>
    %109 = arith.mulf %106, %108 : vector<4x256xf32>
    %c0_16 = arith.constant 0 : index
    %c0_17 = arith.constant 0 : index
    %110 = vector.load %arg8[%c0_16, %c0_17] : memref<4x1xf32, #tpu.memory_space<vmem>>, vector<4x1xf32>
    %111 = vector.broadcast %110 : vector<4x1xf32> to vector<4x256xf32>
    %112 = arith.addf %109, %111 : vector<4x256xf32>
    %cst_18 = arith.constant 0.000000e+00 : f32
    %113 = vector.broadcast %cst_18 : f32 to vector<4x256xf32>
    %114 = arith.maximumf %112, %113 : vector<4x256xf32>
    %c0_19 = arith.constant 0 : index
    %c0_20 = arith.constant 0 : index
    %115 = vector.load %arg9[%c0_19, %c0_20] : memref<4x9xf32, #tpu.memory_space<vmem>>, vector<4x9xf32>
    %c0_21 = arith.constant 0 : index
    %c0_22 = arith.constant 0 : index
    %116 = vector.load %arg10[%c0_21, %c0_22] : memref<4x1xf32, #tpu.memory_space<vmem>>, vector<4x1xf32>
    %c0_23 = arith.constant 0 : index
    %c0_24 = arith.constant 0 : index
    %117 = vector.load %arg11[%c0_23, %c0_24] : memref<4x1xf32, #tpu.memory_space<vmem>>, vector<4x1xf32>
    %cst_25 = arith.constant 0.000000e+00 : f32
    %118 = vector.broadcast %cst_25 : f32 to vector<4x256xf32>
    %c17_i32_26 = arith.constant 17 : i32
    %119 = tpu.dynamic_rotate %114 by %c17_i32_26 dim 1 : vector<4x256xf32>, i32 -> vector<4x256xf32>
    %120 = vector.extract_strided_slice %0 {offsets = [0, 0], sizes = [1, 256], strides = [1, 1]} : vector<9x256xf32> to vector<1x256xf32>
    %121 = vector.broadcast %120 : vector<1x256xf32> to vector<4x256xf32>
    %122 = arith.mulf %119, %121 : vector<4x256xf32>
    %123 = vector.extract_strided_slice %115 {offsets = [0, 0], sizes = [4, 1], strides = [1, 1]} : vector<4x9xf32> to vector<4x1xf32>
    %124 = vector.broadcast %123 : vector<4x1xf32> to vector<4x256xf32>
    %125 = arith.mulf %122, %124 : vector<4x256xf32>
    %126 = arith.addf %118, %125 : vector<4x256xf32>
    %c16_i32_27 = arith.constant 16 : i32
    %127 = tpu.dynamic_rotate %114 by %c16_i32_27 dim 1 : vector<4x256xf32>, i32 -> vector<4x256xf32>
    %128 = vector.extract_strided_slice %0 {offsets = [1, 0], sizes = [1, 256], strides = [1, 1]} : vector<9x256xf32> to vector<1x256xf32>
    %129 = vector.broadcast %128 : vector<1x256xf32> to vector<4x256xf32>
    %130 = arith.mulf %127, %129 : vector<4x256xf32>
    %131 = vector.extract_strided_slice %115 {offsets = [0, 1], sizes = [4, 1], strides = [1, 1]} : vector<4x9xf32> to vector<4x1xf32>
    %132 = vector.broadcast %131 : vector<4x1xf32> to vector<4x256xf32>
    %133 = arith.mulf %130, %132 : vector<4x256xf32>
    %134 = arith.addf %126, %133 : vector<4x256xf32>
    %c15_i32_28 = arith.constant 15 : i32
    %135 = tpu.dynamic_rotate %114 by %c15_i32_28 dim 1 : vector<4x256xf32>, i32 -> vector<4x256xf32>
    %136 = vector.extract_strided_slice %0 {offsets = [2, 0], sizes = [1, 256], strides = [1, 1]} : vector<9x256xf32> to vector<1x256xf32>
    %137 = vector.broadcast %136 : vector<1x256xf32> to vector<4x256xf32>
    %138 = arith.mulf %135, %137 : vector<4x256xf32>
    %139 = vector.extract_strided_slice %115 {offsets = [0, 2], sizes = [4, 1], strides = [1, 1]} : vector<4x9xf32> to vector<4x1xf32>
    %140 = vector.broadcast %139 : vector<4x1xf32> to vector<4x256xf32>
    %141 = arith.mulf %138, %140 : vector<4x256xf32>
    %142 = arith.addf %134, %141 : vector<4x256xf32>
    %c1_i32_29 = arith.constant 1 : i32
    %143 = tpu.dynamic_rotate %114 by %c1_i32_29 dim 1 : vector<4x256xf32>, i32 -> vector<4x256xf32>
    %144 = vector.extract_strided_slice %0 {offsets = [3, 0], sizes = [1, 256], strides = [1, 1]} : vector<9x256xf32> to vector<1x256xf32>
    %145 = vector.broadcast %144 : vector<1x256xf32> to vector<4x256xf32>
    %146 = arith.mulf %143, %145 : vector<4x256xf32>
    %147 = vector.extract_strided_slice %115 {offsets = [0, 3], sizes = [4, 1], strides = [1, 1]} : vector<4x9xf32> to vector<4x1xf32>
    %148 = vector.broadcast %147 : vector<4x1xf32> to vector<4x256xf32>
    %149 = arith.mulf %146, %148 : vector<4x256xf32>
    %150 = arith.addf %142, %149 : vector<4x256xf32>
    %151 = vector.extract_strided_slice %115 {offsets = [0, 4], sizes = [4, 1], strides = [1, 1]} : vector<4x9xf32> to vector<4x1xf32>
    %152 = vector.broadcast %151 : vector<4x1xf32> to vector<4x256xf32>
    %153 = arith.mulf %114, %152 : vector<4x256xf32>
    %154 = arith.addf %150, %153 : vector<4x256xf32>
    %c255_i32_30 = arith.constant 255 : i32
    %155 = tpu.dynamic_rotate %114 by %c255_i32_30 dim 1 : vector<4x256xf32>, i32 -> vector<4x256xf32>
    %156 = vector.extract_strided_slice %0 {offsets = [5, 0], sizes = [1, 256], strides = [1, 1]} : vector<9x256xf32> to vector<1x256xf32>
    %157 = vector.broadcast %156 : vector<1x256xf32> to vector<4x256xf32>
    %158 = arith.mulf %155, %157 : vector<4x256xf32>
    %159 = vector.extract_strided_slice %115 {offsets = [0, 5], sizes = [4, 1], strides = [1, 1]} : vector<4x9xf32> to vector<4x1xf32>
    %160 = vector.broadcast %159 : vector<4x1xf32> to vector<4x256xf32>
    %161 = arith.mulf %158, %160 : vector<4x256xf32>
    %162 = arith.addf %154, %161 : vector<4x256xf32>
    %c241_i32_31 = arith.constant 241 : i32
    %163 = tpu.dynamic_rotate %114 by %c241_i32_31 dim 1 : vector<4x256xf32>, i32 -> vector<4x256xf32>
    %164 = vector.extract_strided_slice %0 {offsets = [6, 0], sizes = [1, 256], strides = [1, 1]} : vector<9x256xf32> to vector<1x256xf32>
    %165 = vector.broadcast %164 : vector<1x256xf32> to vector<4x256xf32>
    %166 = arith.mulf %163, %165 : vector<4x256xf32>
    %167 = vector.extract_strided_slice %115 {offsets = [0, 6], sizes = [4, 1], strides = [1, 1]} : vector<4x9xf32> to vector<4x1xf32>
    %168 = vector.broadcast %167 : vector<4x1xf32> to vector<4x256xf32>
    %169 = arith.mulf %166, %168 : vector<4x256xf32>
    %170 = arith.addf %162, %169 : vector<4x256xf32>
    %c240_i32_32 = arith.constant 240 : i32
    %171 = tpu.dynamic_rotate %114 by %c240_i32_32 dim 1 : vector<4x256xf32>, i32 -> vector<4x256xf32>
    %172 = vector.extract_strided_slice %0 {offsets = [7, 0], sizes = [1, 256], strides = [1, 1]} : vector<9x256xf32> to vector<1x256xf32>
    %173 = vector.broadcast %172 : vector<1x256xf32> to vector<4x256xf32>
    %174 = arith.mulf %171, %173 : vector<4x256xf32>
    %175 = vector.extract_strided_slice %115 {offsets = [0, 7], sizes = [4, 1], strides = [1, 1]} : vector<4x9xf32> to vector<4x1xf32>
    %176 = vector.broadcast %175 : vector<4x1xf32> to vector<4x256xf32>
    %177 = arith.mulf %174, %176 : vector<4x256xf32>
    %178 = arith.addf %170, %177 : vector<4x256xf32>
    %c239_i32_33 = arith.constant 239 : i32
    %179 = tpu.dynamic_rotate %114 by %c239_i32_33 dim 1 : vector<4x256xf32>, i32 -> vector<4x256xf32>
    %180 = vector.extract_strided_slice %0 {offsets = [8, 0], sizes = [1, 256], strides = [1, 1]} : vector<9x256xf32> to vector<1x256xf32>
    %181 = vector.broadcast %180 : vector<1x256xf32> to vector<4x256xf32>
    %182 = arith.mulf %179, %181 : vector<4x256xf32>
    %183 = vector.extract_strided_slice %115 {offsets = [0, 8], sizes = [4, 1], strides = [1, 1]} : vector<4x9xf32> to vector<4x1xf32>
    %184 = vector.broadcast %183 : vector<4x1xf32> to vector<4x256xf32>
    %185 = arith.mulf %182, %184 : vector<4x256xf32>
    %186 = arith.addf %178, %185 : vector<4x256xf32>
    %187 = vector.broadcast %116 : vector<4x1xf32> to vector<4x256xf32>
    %188 = arith.mulf %186, %187 : vector<4x256xf32>
    %189 = vector.broadcast %117 : vector<4x1xf32> to vector<4x256xf32>
    %190 = arith.addf %188, %189 : vector<4x256xf32>
    %cst_34 = arith.constant 0.000000e+00 : f32
    %191 = vector.broadcast %cst_34 : f32 to vector<4x256xf32>
    %192 = arith.maximumf %190, %191 : vector<4x256xf32>
    %c0_35 = arith.constant 0 : index
    %c0_36 = arith.constant 0 : index
    %193 = vector.load %arg12[%c0_35, %c0_36] : memref<4x4xf32, #tpu.memory_space<vmem>>, vector<4x4xf32>
    %cst_37 = arith.constant 0.000000e+00 : f32
    %194 = vector.broadcast %cst_37 : f32 to vector<4x256xf32>
    %195 = vector.extract_strided_slice %192 {offsets = [0, 0], sizes = [1, 256], strides = [1, 1]} : vector<4x256xf32> to vector<1x256xf32>
    %196 = vector.extract_strided_slice %193 {offsets = [0, 0], sizes = [4, 1], strides = [1, 1]} : vector<4x4xf32> to vector<4x1xf32>
    %197 = vector.broadcast %195 : vector<1x256xf32> to vector<4x256xf32>
    %198 = vector.broadcast %196 : vector<4x1xf32> to vector<4x256xf32>
    %199 = arith.mulf %197, %198 : vector<4x256xf32>
    %200 = arith.addf %194, %199 : vector<4x256xf32>
    %201 = vector.extract_strided_slice %192 {offsets = [1, 0], sizes = [1, 256], strides = [1, 1]} : vector<4x256xf32> to vector<1x256xf32>
    %202 = vector.extract_strided_slice %193 {offsets = [0, 1], sizes = [4, 1], strides = [1, 1]} : vector<4x4xf32> to vector<4x1xf32>
    %203 = vector.broadcast %201 : vector<1x256xf32> to vector<4x256xf32>
    %204 = vector.broadcast %202 : vector<4x1xf32> to vector<4x256xf32>
    %205 = arith.mulf %203, %204 : vector<4x256xf32>
    %206 = arith.addf %200, %205 : vector<4x256xf32>
    %207 = vector.extract_strided_slice %192 {offsets = [2, 0], sizes = [1, 256], strides = [1, 1]} : vector<4x256xf32> to vector<1x256xf32>
    %208 = vector.extract_strided_slice %193 {offsets = [0, 2], sizes = [4, 1], strides = [1, 1]} : vector<4x4xf32> to vector<4x1xf32>
    %209 = vector.broadcast %207 : vector<1x256xf32> to vector<4x256xf32>
    %210 = vector.broadcast %208 : vector<4x1xf32> to vector<4x256xf32>
    %211 = arith.mulf %209, %210 : vector<4x256xf32>
    %212 = arith.addf %206, %211 : vector<4x256xf32>
    %213 = vector.extract_strided_slice %192 {offsets = [3, 0], sizes = [1, 256], strides = [1, 1]} : vector<4x256xf32> to vector<1x256xf32>
    %214 = vector.extract_strided_slice %193 {offsets = [0, 3], sizes = [4, 1], strides = [1, 1]} : vector<4x4xf32> to vector<4x1xf32>
    %215 = vector.broadcast %213 : vector<1x256xf32> to vector<4x256xf32>
    %216 = vector.broadcast %214 : vector<4x1xf32> to vector<4x256xf32>
    %217 = arith.mulf %215, %216 : vector<4x256xf32>
    %218 = arith.addf %212, %217 : vector<4x256xf32>
    %c0_38 = arith.constant 0 : index
    %c0_39 = arith.constant 0 : index
    %219 = vector.load %arg13[%c0_38, %c0_39] : memref<4x1xf32, #tpu.memory_space<vmem>>, vector<4x1xf32>
    %220 = vector.broadcast %219 : vector<4x1xf32> to vector<4x256xf32>
    %221 = arith.mulf %218, %220 : vector<4x256xf32>
    %c0_40 = arith.constant 0 : index
    %c0_41 = arith.constant 0 : index
    %222 = vector.load %arg14[%c0_40, %c0_41] : memref<4x1xf32, #tpu.memory_space<vmem>>, vector<4x1xf32>
    %223 = vector.broadcast %222 : vector<4x1xf32> to vector<4x256xf32>
    %224 = arith.addf %221, %223 : vector<4x256xf32>
    %cst_42 = arith.constant 0.000000e+00 : f32
    %225 = vector.broadcast %cst_42 : f32 to vector<4x256xf32>
    %226 = arith.maximumf %224, %225 : vector<4x256xf32>
    %c0_43 = arith.constant 0 : index
    %c0_44 = arith.constant 0 : index
    %227 = vector.load %arg15[%c0_43, %c0_44] : memref<8x4xf32, #tpu.memory_space<vmem>>, vector<8x4xf32>
    %cst_45 = arith.constant 0.000000e+00 : f32
    %228 = vector.broadcast %cst_45 : f32 to vector<8x256xf32>
    %229 = vector.extract_strided_slice %226 {offsets = [0, 0], sizes = [1, 256], strides = [1, 1]} : vector<4x256xf32> to vector<1x256xf32>
    %230 = vector.extract_strided_slice %227 {offsets = [0, 0], sizes = [8, 1], strides = [1, 1]} : vector<8x4xf32> to vector<8x1xf32>
    %231 = vector.broadcast %229 : vector<1x256xf32> to vector<8x256xf32>
    %232 = vector.broadcast %230 : vector<8x1xf32> to vector<8x256xf32>
    %233 = arith.mulf %231, %232 : vector<8x256xf32>
    %234 = arith.addf %228, %233 : vector<8x256xf32>
    %235 = vector.extract_strided_slice %226 {offsets = [1, 0], sizes = [1, 256], strides = [1, 1]} : vector<4x256xf32> to vector<1x256xf32>
    %236 = vector.extract_strided_slice %227 {offsets = [0, 1], sizes = [8, 1], strides = [1, 1]} : vector<8x4xf32> to vector<8x1xf32>
    %237 = vector.broadcast %235 : vector<1x256xf32> to vector<8x256xf32>
    %238 = vector.broadcast %236 : vector<8x1xf32> to vector<8x256xf32>
    %239 = arith.mulf %237, %238 : vector<8x256xf32>
    %240 = arith.addf %234, %239 : vector<8x256xf32>
    %241 = vector.extract_strided_slice %226 {offsets = [2, 0], sizes = [1, 256], strides = [1, 1]} : vector<4x256xf32> to vector<1x256xf32>
    %242 = vector.extract_strided_slice %227 {offsets = [0, 2], sizes = [8, 1], strides = [1, 1]} : vector<8x4xf32> to vector<8x1xf32>
    %243 = vector.broadcast %241 : vector<1x256xf32> to vector<8x256xf32>
    %244 = vector.broadcast %242 : vector<8x1xf32> to vector<8x256xf32>
    %245 = arith.mulf %243, %244 : vector<8x256xf32>
    %246 = arith.addf %240, %245 : vector<8x256xf32>
    %247 = vector.extract_strided_slice %226 {offsets = [3, 0], sizes = [1, 256], strides = [1, 1]} : vector<4x256xf32> to vector<1x256xf32>
    %248 = vector.extract_strided_slice %227 {offsets = [0, 3], sizes = [8, 1], strides = [1, 1]} : vector<8x4xf32> to vector<8x1xf32>
    %249 = vector.broadcast %247 : vector<1x256xf32> to vector<8x256xf32>
    %250 = vector.broadcast %248 : vector<8x1xf32> to vector<8x256xf32>
    %251 = arith.mulf %249, %250 : vector<8x256xf32>
    %252 = arith.addf %246, %251 : vector<8x256xf32>
    %c0_46 = arith.constant 0 : index
    %c0_47 = arith.constant 0 : index
    %253 = vector.load %arg16[%c0_46, %c0_47] : memref<8x1xf32, #tpu.memory_space<vmem>>, vector<8x1xf32>
    %254 = vector.broadcast %253 : vector<8x1xf32> to vector<8x256xf32>
    %255 = arith.addf %252, %254 : vector<8x256xf32>
    %c0_48 = arith.constant 0 : index
    %c0_49 = arith.constant 0 : index
    %c0_50 = arith.constant 0 : index
    %256 = vector.load %arg17[%c0_48, %c0_49, %c0_50] : memref<1x8x256xf32, #tpu.memory_space<vmem>>, vector<1x8x256xf32>
    %257 = vector.shape_cast %256 : vector<1x8x256xf32> to vector<8x256xf32>
    %258 = vector.shape_cast %255 : vector<8x256xf32> to vector<1x8x256xf32>
    tpu.vector_store %arg17[%c0_48, %c0_49, %c0_50], %258 {strides = array<i32>} : memref<1x8x256xf32, #tpu.memory_space<vmem>>, vector<1x8x256xf32>,
    return
  }
  func.func @transform_0(%arg0: i32) -> (i32, i32, i32) {
    %c0_i32 = arith.constant 0 : i32
    %c0_i32_0 = arith.constant 0 : i32
    %c0_i32_1 = arith.constant 0 : i32
    return %arg0, %c0_i32, %c0_i32_0 : i32, i32, i32
  }
  func.func @transform_1(%arg0: i32) -> (i32, i32) {
    %c0_i32 = arith.constant 0 : i32
    %c0_i32_0 = arith.constant 0 : i32
    %c0_i32_1 = arith.constant 0 : i32
    return %c0_i32, %c0_i32_0 : i32, i32
  }
  func.func @transform_2(%arg0: i32) -> (i32, i32) {
    %c0_i32 = arith.constant 0 : i32
    %c0_i32_0 = arith.constant 0 : i32
    %c0_i32_1 = arith.constant 0 : i32
    return %c0_i32, %c0_i32_0 : i32, i32
  }
  func.func @transform_3(%arg0: i32) -> (i32, i32) {
    %c0_i32 = arith.constant 0 : i32
    %c0_i32_0 = arith.constant 0 : i32
    %c0_i32_1 = arith.constant 0 : i32
    return %c0_i32, %c0_i32_0 : i32, i32
  }
  func.func @transform_4(%arg0: i32) -> (i32, i32) {
    %c0_i32 = arith.constant 0 : i32
    %c0_i32_0 = arith.constant 0 : i32
    %c0_i32_1 = arith.constant 0 : i32
    return %c0_i32, %c0_i32_0 : i32, i32
  }
  func.func @transform_5(%arg0: i32) -> (i32, i32) {
    %c0_i32 = arith.constant 0 : i32
    %c0_i32_0 = arith.constant 0 : i32
    %c0_i32_1 = arith.constant 0 : i32
    return %c0_i32, %c0_i32_0 : i32, i32
  }
  func.func @transform_6(%arg0: i32) -> (i32, i32) {
    %c0_i32 = arith.constant 0 : i32
    %c0_i32_0 = arith.constant 0 : i32
    %c0_i32_1 = arith.constant 0 : i32
    return %c0_i32, %c0_i32_0 : i32, i32
  }
  func.func @transform_7(%arg0: i32) -> (i32, i32) {
    %c0_i32 = arith.constant 0 : i32
    %c0_i32_0 = arith.constant 0 : i32
    %c0_i32_1 = arith.constant 0 : i32
    return %c0_i32, %c0_i32_0 : i32, i32
  }
  func.func @transform_8(%arg0: i32) -> (i32, i32) {
    %c0_i32 = arith.constant 0 : i32
    %c0_i32_0 = arith.constant 0 : i32
    %c0_i32_1 = arith.constant 0 : i32
    return %c0_i32, %c0_i32_0 : i32, i32
  }
  func.func @transform_9(%arg0: i32) -> (i32, i32) {
    %c0_i32 = arith.constant 0 : i32
    %c0_i32_0 = arith.constant 0 : i32
    %c0_i32_1 = arith.constant 0 : i32
    return %c0_i32, %c0_i32_0 : i32, i32
  }
  func.func @transform_10(%arg0: i32) -> (i32, i32) {
    %c0_i32 = arith.constant 0 : i32
    %c0_i32_0 = arith.constant 0 : i32
    %c0_i32_1 = arith.constant 0 : i32
    return %c0_i32, %c0_i32_0 : i32, i32
  }
  func.func @transform_11(%arg0: i32) -> (i32, i32) {
    %c0_i32 = arith.constant 0 : i32
    %c0_i32_0 = arith.constant 0 : i32
    %c0_i32_1 = arith.constant 0 : i32
    return %c0_i32, %c0_i32_0 : i32, i32
  }
  func.func @transform_12(%arg0: i32) -> (i32, i32) {
    %c0_i32 = arith.constant 0 : i32
    %c0_i32_0 = arith.constant 0 : i32
    %c0_i32_1 = arith.constant 0 : i32
    return %c0_i32, %c0_i32_0 : i32, i32
  }
  func.func @transform_13(%arg0: i32) -> (i32, i32) {
    %c0_i32 = arith.constant 0 : i32
    %c0_i32_0 = arith.constant 0 : i32
    %c0_i32_1 = arith.constant 0 : i32
    return %c0_i32, %c0_i32_0 : i32, i32
  }
  func.func @transform_14(%arg0: i32) -> (i32, i32) {
    %c0_i32 = arith.constant 0 : i32
    %c0_i32_0 = arith.constant 0 : i32
    %c0_i32_1 = arith.constant 0 : i32
    return %c0_i32, %c0_i32_0 : i32, i32
  }
  func.func @transform_15(%arg0: i32) -> (i32, i32) {
    %c0_i32 = arith.constant 0 : i32
    %c0_i32_0 = arith.constant 0 : i32
    %c0_i32_1 = arith.constant 0 : i32
    return %c0_i32, %c0_i32_0 : i32, i32
  }
  func.func @transform_16(%arg0: i32) -> (i32, i32, i32) {
    %c0_i32 = arith.constant 0 : i32
    %c0_i32_0 = arith.constant 0 : i32
    %c0_i32_1 = arith.constant 0 : i32
    return %arg0, %c0_i32, %c0_i32_0 : i32, i32, i32
  }
}

</mosaic_0001>

<llo_original>
// kernel: classifier_forward.1
$region0: #{classifier_forward.1}
  #allocation0 [shape = 'u32[]', space=smem, size = 0x4, offset = 0x4, fixed_abs, tag = 'smem constant byte address 0x4 - core index']
  #allocation1 [shape = 'u32[144,128]{1,0:T(1,128)}', space=vmem, size = 0x12000, scoped, tag = 'internal scratch']
  %s0 = inlined_call_operand.vmem [shape: f32[2,4,256], index: 0, kind: input, shape index: {}]
  %s1 = inlined_call_operand.vmem [shape: f32[9,256], index: 1, kind: input, shape index: {}]
  %s2 = inlined_call_operand.vmem [shape: f32[4,9], index: 2, kind: input, shape index: {}]
  %s3 = inlined_call_operand.vmem [shape: f32[4,1], index: 3, kind: input, shape index: {}]
  %s4 = inlined_call_operand.vmem [shape: f32[4,1], index: 4, kind: input, shape index: {}]
  %s5 = inlined_call_operand.vmem [shape: f32[4,4], index: 5, kind: input, shape index: {}]
  %s6 = inlined_call_operand.vmem [shape: f32[4,1], index: 6, kind: input, shape index: {}]
  %s7 = inlined_call_operand.vmem [shape: f32[4,1], index: 7, kind: input, shape index: {}]
  %s8 = inlined_call_operand.vmem [shape: f32[4,9], index: 8, kind: input, shape index: {}]
  %s9 = inlined_call_operand.vmem [shape: f32[4,1], index: 9, kind: input, shape index: {}]
  %s10 = inlined_call_operand.vmem [shape: f32[4,1], index: 10, kind: input, shape index: {}]
  %s11 = inlined_call_operand.vmem [shape: f32[4,4], index: 11, kind: input, shape index: {}]
  %s12 = inlined_call_operand.vmem [shape: f32[4,1], index: 12, kind: input, shape index: {}]
  %s13 = inlined_call_operand.vmem [shape: f32[4,1], index: 13, kind: input, shape index: {}]
  %s14 = inlined_call_operand.vmem [shape: f32[8,4], index: 14, kind: input, shape index: {}]
  %s15 = inlined_call_operand.vmem [shape: f32[8,1], index: 15, kind: input, shape index: {}]
  %s16 = inlined_call_operand.vmem [shape: f32[2,8,256], index: 16, kind: output, shape index: {}]
  %s17 = sld [smem:[#allocation0]]
  $region97: #{classifier_forward.1} parent=0
    _
  %s19 = ssub.s32 1, %s17
  %s20 = scalar_select 0, %s19, %s17
  loop: start=0, step=1, limit=4
  $region2: #{classifier_forward.1} parent=0 // loop_pre_header
    _
  $region3: #{classifier_forward.1} parent=0 // loop_header
    %s22 = sphi 0, %s26
    %p23 = scmp.ge.s32.totalorder %s22, 4
    %s32 = sphi 0, %s34
    %s35 = sphi 0, %s32
    %s36 = sphi 0, %s35
    %s52 = sphi 0, %s36
    %s56 = sphi 0, %s56
    %s58 = sphi 0, %s56
    %s59 = sphi 0, %s58
    %s73 = sphi 0, %s59
    %s77 = sphi 0, %s77
    %s79 = sphi 0, %s77
    %s80 = sphi 0, %s79
    %s94 = sphi 0, %s80
    %s98 = sphi 0, %s98
    %s100 = sphi 0, %s98
    %s101 = sphi 0, %s100
    %s115 = sphi 0, %s101
    %s119 = sphi 0, %s119
    %s121 = sphi 0, %s119
    %s122 = sphi 0, %s121
    %s136 = sphi 0, %s122
    %s140 = sphi 0, %s140
    %s142 = sphi 0, %s140
    %s143 = sphi 0, %s142
    %s157 = sphi 0, %s143
    %s161 = sphi 0, %s161
    %s163 = sphi 0, %s161
    %s164 = sphi 0, %s163
    %s178 = sphi 0, %s164
    %s182 = sphi 0, %s182
    %s184 = sphi 0, %s182
    %s185 = sphi 0, %s184
    %s199 = sphi 0, %s185
    %s203 = sphi 0, %s203
    %s205 = sphi 0, %s203
    %s206 = sphi 0, %s205
    %s220 = sphi 0, %s206
    %s224 = sphi 0, %s224
    %s226 = sphi 0, %s224
    %s227 = sphi 0, %s226
    %s241 = sphi 0, %s227
    %s245 = sphi 0, %s245
    %s247 = sphi 0, %s245
    %s248 = sphi 0, %s247
    %s262 = sphi 0, %s248
    %s266 = sphi 0, %s266
    %s268 = sphi 0, %s266
    %s269 = sphi 0, %s268
    %s283 = sphi 0, %s269
    %s287 = sphi 0, %s287
    %s289 = sphi 0, %s287
    %s290 = sphi 0, %s289
    %s304 = sphi 0, %s290
    %s308 = sphi 0, %s308
    %s310 = sphi 0, %s308
    %s311 = sphi 0, %s310
    %s325 = sphi 0, %s311
    %s329 = sphi 0, %s329
    %s331 = sphi 0, %s329
    %s332 = sphi 0, %s331
    %s346 = sphi 0, %s332
    %s350 = sphi 0, %s350
    %s352 = sphi 0, %s350
    %s353 = sphi 0, %s352
    %s367 = sphi 0, %s353
    %s373 = sphi 0, %s375
    %s376 = sphi 0, %s373
    %s377 = sphi 0, %s376
    %s393 = sphi 0, %s377
  $region4: #{classifier_forward.1} parent=0 // loop_header_branch
    %25 = sbr.rel (%p23) target = $region8
  $region5: #{classifier_forward.1} parent=0 // loop_body
    %s27 = ssub.s32 %s22, 1
    %s28 = ssub.s32 %s22, 2
    %s29 = sadd.s32 %s22, 1
    %s30 = ssub.s32 %s22, %s29
    %p31 = scmp.eq.s32.totalorder %s30, 0
    %s33 = sadd.s32 %s32, 1
    %s34 = scalar_select %p31, %s32, %s33
    %p37 = pneg %p31
    %p38 = scmp.eq.s32.totalorder %s22, 1
    %p39 = por %p37, %p38
    %p40 = scmp.ne.s32.totalorder %s32, %s35
    %p41 = scmp.eq.s32.totalorder %s22, 0
    %p42 = por %p40, %p41
    %p43 = scmp.ne.s32.totalorder %s32, %s35
    %p44 = scmp.eq.s32.totalorder %s27, 1
    %p45 = por %p43, %p44
    %p46 = scmp.ne.s32.totalorder %s35, %s36
    %p47 = scmp.eq.s32.totalorder %s27, 0
    %p48 = por %p46, %p47
    %p49 = scmp.ne.s32.totalorder %s35, %s36
    %p50 = scmp.eq.s32.totalorder %s28, 1
    %p51 = por %p49, %p50
    %p53 = scmp.ne.s32.totalorder %s36, %s52
    %p54 = scmp.eq.s32.totalorder %s28, 0
    %p55 = por %p53, %p54
    %s57 = sadd.s32 %s56, 1
    %p60 = scmp.eq.s32.totalorder %s22, 1
    %p61 = scmp.ne.s32.totalorder %s56, %s58
    %p62 = scmp.eq.s32.totalorder %s22, 0
    %p63 = por %p61, %p62
    %p64 = scmp.ne.s32.totalorder %s56, %s58
    %p65 = scmp.eq.s32.totalorder %s27, 1
    %p66 = por %p64, %p65
    %p67 = scmp.ne.s32.totalorder %s58, %s59
    %p68 = scmp.eq.s32.totalorder %s27, 0
    %p69 = por %p67, %p68
    %p70 = scmp.ne.s32.totalorder %s58, %s59
    %p71 = scmp.eq.s32.totalorder %s28, 1
    %p72 = por %p70, %p71
    %p74 = scmp.ne.s32.totalorder %s59, %s73
    %p75 = scmp.eq.s32.totalorder %s28, 0
    %p76 = por %p74, %p75
    %s78 = sadd.s32 %s77, 1
    %p81 = scmp.eq.s32.totalorder %s22, 1
    %p82 = scmp.ne.s32.totalorder %s77, %s79
    %p83 = scmp.eq.s32.totalorder %s22, 0
    %p84 = por %p82, %p83
    %p85 = scmp.ne.s32.totalorder %s77, %s79
    %p86 = scmp.eq.s32.totalorder %s27, 1
    %p87 = por %p85, %p86
    %p88 = scmp.ne.s32.totalorder %s79, %s80
    %p89 = scmp.eq.s32.totalorder %s27, 0
    %p90 = por %p88, %p89
    %p91 = scmp.ne.s32.totalorder %s79, %s80
    %p92 = scmp.eq.s32.totalorder %s28, 1
    %p93 = por %p91, %p92
    %p95 = scmp.ne.s32.totalorder %s80, %s94
    %p96 = scmp.eq.s32.totalorder %s28, 0
    %p97 = por %p95, %p96
    %s99 = sadd.s32 %s98, 1
    %p102 = scmp.eq.s32.totalorder %s22, 1
    %p103 = scmp.ne.s32.totalorder %s98, %s100
    %p104 = scmp.eq.s32.totalorder %s22, 0
    %p105 = por %p103, %p104
    %p106 = scmp.ne.s32.totalorder %s98, %s100
    %p107 = scmp.eq.s32.totalorder %s27, 1
    %p108 = por %p106, %p107
    %p109 = scmp.ne.s32.totalorder %s100, %s101
    %p110 = scmp.eq.s32.totalorder %s27, 0
    %p111 = por %p109, %p110
    %p112 = scmp.ne.s32.totalorder %s100, %s101
    %p113 = scmp.eq.s32.totalorder %s28, 1
    %p114 = por %p112, %p113
    %p116 = scmp.ne.s32.totalorder %s101, %s115
    %p117 = scmp.eq.s32.totalorder %s28, 0
    %p118 = por %p116, %p117
    %s120 = sadd.s32 %s119, 1
    %p123 = scmp.eq.s32.totalorder %s22, 1
    %p124 = scmp.ne.s32.totalorder %s119, %s121
    %p125 = scmp.eq.s32.totalorder %s22, 0
    %p126 = por %p124, %p125
    %p127 = scmp.ne.s32.totalorder %s119, %s121
    %p128 = scmp.eq.s32.totalorder %s27, 1
    %p129 = por %p127, %p128
    %p130 = scmp.ne.s32.totalorder %s121, %s122
    %p131 = scmp.eq.s32.totalorder %s27, 0
    %p132 = por %p130, %p131
    %p133 = scmp.ne.s32.totalorder %s121, %s122
    %p134 = scmp.eq.s32.totalorder %s28, 1
    %p135 = por %p133, %p134
    %p137 = scmp.ne.s32.totalorder %s122, %s136
    %p138 = scmp.eq.s32.totalorder %s28, 0
    %p139 = por %p137, %p138
    %s141 = sadd.s32 %s140, 1
    %p144 = scmp.eq.s32.totalorder %s22, 1
    %p145 = scmp.ne.s32.totalorder %s140, %s142
    %p146 = scmp.eq.s32.totalorder %s22, 0
    %p147 = por %p145, %p146
    %p148 = scmp.ne.s32.totalorder %s140, %s142
    %p149 = scmp.eq.s32.totalorder %s27, 1
    %p150 = por %p148, %p149
    %p151 = scmp.ne.s32.totalorder %s142, %s143
    %p152 = scmp.eq.s32.totalorder %s27, 0
    %p153 = por %p151, %p152
    %p154 = scmp.ne.s32.totalorder %s142, %s143
    %p155 = scmp.eq.s32.totalorder %s28, 1
    %p156 = por %p154, %p155
    %p158 = scmp.ne.s32.totalorder %s143, %s157
    %p159 = scmp.eq.s32.totalorder %s28, 0
    %p160 = por %p158, %p159
    %s162 = sadd.s32 %s161, 1
    %p165 = scmp.eq.s32.totalorder %s22, 1
    %p166 = scmp.ne.s32.totalorder %s161, %s163
    %p167 = scmp.eq.s32.totalorder %s22, 0
    %p168 = por %p166, %p167
    %p169 = scmp.ne.s32.totalorder %s161, %s163
    %p170 = scmp.eq.s32.totalorder %s27, 1
    %p171 = por %p169, %p170
    %p172 = scmp.ne.s32.totalorder %s163, %s164
    %p173 = scmp.eq.s32.totalorder %s27, 0
    %p174 = por %p172, %p173
    %p175 = scmp.ne.s32.totalorder %s163, %s164
    %p176 = scmp.eq.s32.totalorder %s28, 1
    %p177 = por %p175, %p176
    %p179 = scmp.ne.s32.totalorder %s164, %s178
    %p180 = scmp.eq.s32.totalorder %s28, 0
    %p181 = por %p179, %p180
    %s183 = sadd.s32 %s182, 1
    %p186 = scmp.eq.s32.totalorder %s22, 1
    %p187 = scmp.ne.s32.totalorder %s182, %s184
    %p188 = scmp.eq.s32.totalorder %s22, 0
    %p189 = por %p187, %p188
    %p190 = scmp.ne.s32.totalorder %s182, %s184
    %p191 = scmp.eq.s32.totalorder %s27, 1
    %p192 = por %p190, %p191
    %p193 = scmp.ne.s32.totalorder %s184, %s185
    %p194 = scmp.eq.s32.totalorder %s27, 0
    %p195 = por %p193, %p194
    %p196 = scmp.ne.s32.totalorder %s184, %s185
    %p197 = scmp.eq.s32.totalorder %s28, 1
    %p198 = por %p196, %p197
    %p200 = scmp.ne.s32.totalorder %s185, %s199
    %p201 = scmp.eq.s32.totalorder %s28, 0
    %p202 = por %p200, %p201
    %s204 = sadd.s32 %s203, 1
    %p207 = scmp.eq.s32.totalorder %s22, 1
    %p208 = scmp.ne.s32.totalorder %s203, %s205
    %p209 = scmp.eq.s32.totalorder %s22, 0
    %p210 = por %p208, %p209
    %p211 = scmp.ne.s32.totalorder %s203, %s205
    %p212 = scmp.eq.s32.totalorder %s27, 1
    %p213 = por %p211, %p212
    %p214 = scmp.ne.s32.totalorder %s205, %s206
    %p215 = scmp.eq.s32.totalorder %s27, 0
    %p216 = por %p214, %p215
    %p217 = scmp.ne.s32.totalorder %s205, %s206
    %p218 = scmp.eq.s32.totalorder %s28, 1
    %p219 = por %p217, %p218
    %p221 = scmp.ne.s32.totalorder %s206, %s220
    %p222 = scmp.eq.s32.totalorder %s28, 0
    %p223 = por %p221, %p222
    %s225 = sadd.s32 %s224, 1
    %p228 = scmp.eq.s32.totalorder %s22, 1
    %p229 = scmp.ne.s32.totalorder %s224, %s226
    %p230 = scmp.eq.s32.totalorder %s22, 0
    %p231 = por %p229, %p230
    %p232 = scmp.ne.s32.totalorder %s224, %s226
    %p233 = scmp.eq.s32.totalorder %s27, 1
    %p234 = por %p232, %p233
    %p235 = scmp.ne.s32.totalorder %s226, %s227
    %p236 = scmp.eq.s32.totalorder %s27, 0
    %p237 = por %p235, %p236
    %p238 = scmp.ne.s32.totalorder %s226, %s227
    %p239 = scmp.eq.s32.totalorder %s28, 1
    %p240 = por %p238, %p239
    %p242 = scmp.ne.s32.totalorder %s227, %s241
    %p243 = scmp.eq.s32.totalorder %s28, 0
    %p244 = por %p242, %p243
    %s246 = sadd.s32 %s245, 1
    %p249 = scmp.eq.s32.totalorder %s22, 1
    %p250 = scmp.ne.s32.totalorder %s245, %s247
    %p251 = scmp.eq.s32.totalorder %s22, 0
    %p252 = por %p250, %p251
    %p253 = scmp.ne.s32.totalorder %s245, %s247
    %p254 = scmp.eq.s32.totalorder %s27, 1
    %p255 = por %p253, %p254
    %p256 = scmp.ne.s32.totalorder %s247, %s248
    %p257 = scmp.eq.s32.totalorder %s27, 0
    %p258 = por %p256, %p257
    %p259 = scmp.ne.s32.totalorder %s247, %s248
    %p260 = scmp.eq.s32.totalorder %s28, 1
    %p261 = por %p259, %p260
    %p263 = scmp.ne.s32.totalorder %s248, %s262
    %p264 = scmp.eq.s32.totalorder %s28, 0
    %p265 = por %p263, %p264
    %s267 = sadd.s32 %s266, 1
    %p270 = scmp.eq.s32.totalorder %s22, 1
    %p271 = scmp.ne.s32.totalorder %s266, %s268
    %p272 = scmp.eq.s32.totalorder %s22, 0
    %p273 = por %p271, %p272
    %p274 = scmp.ne.s32.totalorder %s266, %s268
    %p275 = scmp.eq.s32.totalorder %s27, 1
    %p276 = por %p274, %p275
    %p277 = scmp.ne.s32.totalorder %s268, %s269
    %p278 = scmp.eq.s32.totalorder %s27, 0
    %p279 = por %p277, %p278
    %p280 = scmp.ne.s32.totalorder %s268, %s269
    %p281 = scmp.eq.s32.totalorder %s28, 1
    %p282 = por %p280, %p281
    %p284 = scmp.ne.s32.totalorder %s269, %s283
    %p285 = scmp.eq.s32.totalorder %s28, 0
    %p286 = por %p284, %p285
    %s288 = sadd.s32 %s287, 1
    %p291 = scmp.eq.s32.totalorder %s22, 1
    %p292 = scmp.ne.s32.totalorder %s287, %s289
    %p293 = scmp.eq.s32.totalorder %s22, 0
    %p294 = por %p292, %p293
    %p295 = scmp.ne.s32.totalorder %s287, %s289
    %p296 = scmp.eq.s32.totalorder %s27, 1
    %p297 = por %p295, %p296
    %p298 = scmp.ne.s32.totalorder %s289, %s290
    %p299 = scmp.eq.s32.totalorder %s27, 0
    %p300 = por %p298, %p299
    %p301 = scmp.ne.s32.totalorder %s289, %s290
    %p302 = scmp.eq.s32.totalorder %s28, 1
    %p303 = por %p301, %p302
    %p305 = scmp.ne.s32.totalorder %s290, %s304
    %p306 = scmp.eq.s32.totalorder %s28, 0
    %p307 = por %p305, %p306
    %s309 = sadd.s32 %s308, 1
    %p312 = scmp.eq.s32.totalorder %s22, 1
    %p313 = scmp.ne.s32.totalorder %s308, %s310
    %p314 = scmp.eq.s32.totalorder %s22, 0
    %p315 = por %p313, %p314
    %p316 = scmp.ne.s32.totalorder %s308, %s310
    %p317 = scmp.eq.s32.totalorder %s27, 1
    %p318 = por %p316, %p317
    %p319 = scmp.ne.s32.totalorder %s310, %s311
    %p320 = scmp.eq.s32.totalorder %s27, 0
    %p321 = por %p319, %p320
    %p322 = scmp.ne.s32.totalorder %s310, %s311
    %p323 = scmp.eq.s32.totalorder %s28, 1
    %p324 = por %p322, %p323
    %p326 = scmp.ne.s32.totalorder %s311, %s325
    %p327 = scmp.eq.s32.totalorder %s28, 0
    %p328 = por %p326, %p327
    %s330 = sadd.s32 %s329, 1
    %p333 = scmp.eq.s32.totalorder %s22, 1
    %p334 = scmp.ne.s32.totalorder %s329, %s331
    %p335 = scmp.eq.s32.totalorder %s22, 0
    %p336 = por %p334, %p335
    %p337 = scmp.ne.s32.totalorder %s329, %s331
    %p338 = scmp.eq.s32.totalorder %s27, 1
    %p339 = por %p337, %p338
    %p340 = scmp.ne.s32.totalorder %s331, %s332
    %p341 = scmp.eq.s32.totalorder %s27, 0
    %p342 = por %p340, %p341
    %p343 = scmp.ne.s32.totalorder %s331, %s332
    %p344 = scmp.eq.s32.totalorder %s28, 1
    %p345 = por %p343, %p344
    %p347 = scmp.ne.s32.totalorder %s332, %s346
    %p348 = scmp.eq.s32.totalorder %s28, 0
    %p349 = por %p347, %p348
    %s351 = sadd.s32 %s350, 1
    %p354 = scmp.eq.s32.totalorder %s22, 1
    %p355 = scmp.ne.s32.totalorder %s350, %s352
    %p356 = scmp.eq.s32.totalorder %s22, 0
    %p357 = por %p355, %p356
    %p358 = scmp.ne.s32.totalorder %s350, %s352
    %p359 = scmp.eq.s32.totalorder %s27, 1
    %p360 = por %p358, %p359
    %p361 = scmp.ne.s32.totalorder %s352, %s353
    %p362 = scmp.eq.s32.totalorder %s27, 0
    %p363 = por %p361, %p362
    %p364 = scmp.ne.s32.totalorder %s352, %s353
    %p365 = scmp.eq.s32.totalorder %s28, 1
    %p366 = por %p364, %p365
    %p368 = scmp.ne.s32.totalorder %s353, %s367
    %p369 = scmp.eq.s32.totalorder %s28, 0
    %p370 = por %p368, %p369
    %s371 = ssub.s32 %s22, %s29
    %p372 = scmp.eq.s32.totalorder %s371, 0
    %s374 = sadd.s32 %s373, 1
    %s375 = scalar_select %p372, %s373, %s374
    %p378 = pneg %p372
    %p379 = scmp.eq.s32.totalorder %s22, 1
    %p380 = por %p378, %p379
    %p381 = scmp.ne.s32.totalorder %s373, %s376
    %p382 = scmp.eq.s32.totalorder %s22, 0
    %p383 = por %p381, %p382
    %p384 = scmp.ne.s32.totalorder %s373, %s376
    %p385 = scmp.eq.s32.totalorder %s27, 1
    %p386 = por %p384, %p385
    %p387 = scmp.ne.s32.totalorder %s376, %s377
    %p388 = scmp.eq.s32.totalorder %s27, 0
    %p389 = por %p387, %p388
    %p390 = scmp.ne.s32.totalorder %s376, %s377
    %p391 = scmp.eq.s32.totalorder %s28, 1
    %p392 = por %p390, %p391
    %p394 = scmp.ne.s32.totalorder %s377, %s393
    %p395 = scmp.eq.s32.totalorder %s28, 0
    %p396 = por %p394, %p395
    %p397 = scmp.le.s32.totalorder 1, %s22
    %p398 = scmp.lt.s32.totalorder %s22, 3
    %p399 = pnand %p397, %p398
    %p400 = pneg %p399
    // Predicated region
    $region9: #{classifier_forward.1} parent=5 // pred_check
      _
    $region10: #{classifier_forward.1} parent=5 // pred_check_branch
      %402 = sbr.rel (%p399) target = $region12
    $region11: #{classifier_forward.1} parent=5 // pred_region
      %s403 = ssub.s32 %s22, 1
      // Predicated region
      $region13: #{classifier_forward.1} parent=11 // pred_check
        %p404 = pneg %p69
      $region14: #{classifier_forward.1} parent=11 // pred_check_branch
        %406 = sbr.rel (%p404) target = $region16
      $region15: #{classifier_forward.1} parent=11 // pred_region
        _
      $region16: #{classifier_forward.1} parent=11 // pred_fallthru
        _
      // Predicated region
      $region17: #{classifier_forward.1} parent=11 // pred_check
        %p407 = pneg %p90
      $region18: #{classifier_forward.1} parent=11 // pred_check_branch
        %409 = sbr.rel (%p407) target = $region20
      $region19: #{classifier_forward.1} parent=11 // pred_region
        _
      $region20: #{classifier_forward.1} parent=11 // pred_fallthru
        _
      // Predicated region
      $region21: #{classifier_forward.1} parent=11 // pred_check
        %p410 = pneg %p111
      $region22: #{classifier_forward.1} parent=11 // pred_check_branch
        %412 = sbr.rel (%p410) target = $region24
      $region23: #{classifier_forward.1} parent=11 // pred_region
        _
      $region24: #{classifier_forward.1} parent=11 // pred_fallthru
        _
      // Predicated region
      $region25: #{classifier_forward.1} parent=11 // pred_check
        %p413 = pneg %p132
      $region26: #{classifier_forward.1} parent=11 // pred_check_branch
        %415 = sbr.rel (%p413) target = $region28
      $region27: #{classifier_forward.1} parent=11 // pred_region
        _
      $region28: #{classifier_forward.1} parent=11 // pred_fallthru
        _
      // Predicated region
      $region29: #{classifier_forward.1} parent=11 // pred_check
        %p416 = pneg %p153
      $region30: #{classifier_forward.1} parent=11 // pred_check_branch
        %418 = sbr.rel (%p416) target = $region32
      $region31: #{classifier_forward.1} parent=11 // pred_region
        _
      $region32: #{classifier_forward.1} parent=11 // pred_fallthru
        _
      // Predicated region
      $region33: #{classifier_forward.1} parent=11 // pred_check
        %p419 = pneg %p174
      $region34: #{classifier_forward.1} parent=11 // pred_check_branch
        %421 = sbr.rel (%p419) target = $region36
      $region35: #{classifier_forward.1} parent=11 // pred_region
        _
      $region36: #{classifier_forward.1} parent=11 // pred_fallthru
        _
      // Predicated region
      $region37: #{classifier_forward.1} parent=11 // pred_check
        %p422 = pneg %p195
      $region38: #{classifier_forward.1} parent=11 // pred_check_branch
        %424 = sbr.rel (%p422) target = $region40
      $region39: #{classifier_forward.1} parent=11 // pred_region
        _
      $region40: #{classifier_forward.1} parent=11 // pred_fallthru
        _
      // Predicated region
      $region41: #{classifier_forward.1} parent=11 // pred_check
        %p425 = pneg %p216
      $region42: #{classifier_forward.1} parent=11 // pred_check_branch
        %427 = sbr.rel (%p425) target = $region44
      $region43: #{classifier_forward.1} parent=11 // pred_region
        _
      $region44: #{classifier_forward.1} parent=11 // pred_fallthru
        _
      // Predicated region
      $region45: #{classifier_forward.1} parent=11 // pred_check
        %p428 = pneg %p237
      $region46: #{classifier_forward.1} parent=11 // pred_check_branch
        %430 = sbr.rel (%p428) target = $region48
      $region47: #{classifier_forward.1} parent=11 // pred_region
        _
      $region48: #{classifier_forward.1} parent=11 // pred_fallthru
        _
      // Predicated region
      $region49: #{classifier_forward.1} parent=11 // pred_check
        %p431 = pneg %p258
      $region50: #{classifier_forward.1} parent=11 // pred_check_branch
        %433 = sbr.rel (%p431) target = $region52
      $region51: #{classifier_forward.1} parent=11 // pred_region
        _
      $region52: #{classifier_forward.1} parent=11 // pred_fallthru
        _
      // Predicated region
      $region53: #{classifier_forward.1} parent=11 // pred_check
        %p434 = pneg %p279
      $region54: #{classifier_forward.1} parent=11 // pred_check_branch
        %436 = sbr.rel (%p434) target = $region56
      $region55: #{classifier_forward.1} parent=11 // pred_region
        _
      $region56: #{classifier_forward.1} parent=11 // pred_fallthru
        _
      // Predicated region
      $region57: #{classifier_forward.1} parent=11 // pred_check
        %p437 = pneg %p300
      $region58: #{classifier_forward.1} parent=11 // pred_check_branch
        %439 = sbr.rel (%p437) target = $region60
      $region59: #{classifier_forward.1} parent=11 // pred_region
        _
      $region60: #{classifier_forward.1} parent=11 // pred_fallthru
        _
      // Predicated region
      $region61: #{classifier_forward.1} parent=11 // pred_check
        %p440 = pneg %p321
      $region62: #{classifier_forward.1} parent=11 // pred_check_branch
        %442 = sbr.rel (%p440) target = $region64
      $region63: #{classifier_forward.1} parent=11 // pred_region
        _
      $region64: #{classifier_forward.1} parent=11 // pred_fallthru
        _
      // Predicated region
      $region65: #{classifier_forward.1} parent=11 // pred_check
        %p443 = pneg %p342
      $region66: #{classifier_forward.1} parent=11 // pred_check_branch
        %445 = sbr.rel (%p443) target = $region68
      $region67: #{classifier_forward.1} parent=11 // pred_region
        _
      $region68: #{classifier_forward.1} parent=11 // pred_fallthru
        _
      // Predicated region
      $region69: #{classifier_forward.1} parent=11 // pred_check
        %p446 = pneg %p363
      $region70: #{classifier_forward.1} parent=11 // pred_check_branch
        %448 = sbr.rel (%p446) target = $region72
      $region71: #{classifier_forward.1} parent=11 // pred_region
        _
      $region72: #{classifier_forward.1} parent=11 // pred_fallthru
        _
    $region12: #{classifier_forward.1} parent=5 // pred_fallthru
      _
    %p449 = scmp.lt.s32.totalorder %s22, 2
    // Predicated region
    $region73: #{classifier_forward.1} parent=5 // pred_check
      %p450 = pneg %p449
    $region74: #{classifier_forward.1} parent=5 // pred_check_branch
      %452 = sbr.rel (%p450) target = $region76
    $region75: #{classifier_forward.1} parent=5 // pred_region
      // Predicated region
      $region77: #{classifier_forward.1} parent=75 // pred_check
        %p453 = pneg %p42
      $region78: #{classifier_forward.1} parent=75 // pred_check_branch
        %455 = sbr.rel (%p453) target = $region80
      $region79: #{classifier_forward.1} parent=75 // pred_region
        %p456 = scmp.lt.s32.totalorder %s22, 1
        %s457 = scalar_select %p456, %s22, 1
        %s458 = smul.addr %s457, 2
        %s459 = smul.addr %s458, 4
        %s460 = scalar_lea.vmem %s0, %s459
      $region80: #{classifier_forward.1} parent=75 // pred_fallthru
        _
    $region76: #{classifier_forward.1} parent=5 // pred_fallthru
      _
    %p461 = scmp.le.s32.totalorder 1, %s22
    %p462 = scmp.lt.s32.totalorder %s22, 3
    %p463 = pnand %p461, %p462
    %p464 = pneg %p463
    // Predicated region
    $region81: #{classifier_forward.1} parent=5 // pred_check
      _
    $region82: #{classifier_forward.1} parent=5 // pred_check_branch
      %466 = sbr.rel (%p463) target = $region84
    $region83: #{classifier_forward.1} parent=5 // pred_region
      %s467 = ssub.s32 %s22, 1
      %p468 = scmp.lt.s32.totalorder %s27, 1
      %s469 = scalar_select %p468, %s27, 1
      %s470 = smul.addr %s469, 2
      %s471 = smul.addr %s470, 4
      %s472 = scalar_lea.vmem %s0, %s471
      %p473 = pneg %p48
      %p474 = pneg %p45
      %p475 = pneg %p69
      %p476 = pneg %p66
      %p477 = pneg %p90
      %p478 = pneg %p87
      %p479 = pneg %p111
      %p480 = pneg %p108
      %p481 = pneg %p132
      %p482 = pneg %p129
      %p483 = pneg %p153
      %p484 = pneg %p150
      %p485 = pneg %p174
      %p486 = pneg %p171
      %p487 = pneg %p195
      %p488 = pneg %p192
      %p489 = pneg %p216
      %p490 = pneg %p213
      %p491 = pneg %p237
      %p492 = pneg %p234
      %p493 = pneg %p258
      %p494 = pneg %p255
      %p495 = pneg %p279
      %p496 = pneg %p276
      %p497 = pneg %p300
      %p498 = pneg %p297
      %p499 = pneg %p321
      %p500 = pneg %p318
      %p501 = pneg %p342
      %p502 = pneg %p339
      %p503 = pneg %p363
      %p504 = pneg %p360
      %p505 = pneg %p389
      %p506 = pneg %p386
      %p507 = scmp.lt.s32.totalorder %s27, 1
      %s508 = scalar_select %p507, %s27, 1
      %s509 = smul.addr %s508, 2
      %s510 = smul.addr %s509, 8
      %s511 = scalar_lea.vmem %s16, %s510
      %p512 = scmp.lt.s32.totalorder %s27, 1
      %s513 = scalar_select %p512, %s27, 1
      %s514 = smul.addr %s513, 2
      %s515 = smul.addr %s514, 4
      %s516 = scalar_lea.vmem %s0, %s515
      %p517 = scmp.lt.s32.totalorder %s27, 1
      %s518 = scalar_select %p517, %s27, 1
      %s519 = smul.addr %s518, 2
      %s520 = smul.addr %s519, 8
      %s521 = scalar_lea.vmem %s16, %s520
      %v522 = vld [vmem:[%s1] sm:$0xff]
      %v523 = vld [vmem:[%s1 + $0x8] sm:$0xff]
      %v524 = vld [vmem:[%s1 + $0x10] sm:$0x1]
      %v525 = vld [vmem:[%s1 + $0x18] sm:$0x1]
      %v526 = vld [vmem:[%s516] sm:$0xff]
      %v527 = vld [vmem:[%s2] sm:$0xf]
      %v528 = vld [vmem:[%s3] sm:$0xf]
      %v529 = vld [vmem:[%s4] sm:$0xf]
      %v531 = vcombine.high %v526, %v526
      %533 = vrot.lane.b32.xlu0 %v526, 17
      %v534 = vpop.permute.xlu0 %533
      %535 = vrot.lane.b32.xlu0 %v531, 17
      %v536 = vpop.permute.xlu0 %535
      %v537 = vlaneseq
      %v538 = vand.u32 %v537, 127
      %vm539 = vcmp.lt.s32.totalorder %v538, 17
      %v540 = vsel %vm539, %v534, %v536
      %v541 = vsel %vm539, %v536, %v534
      %v542 = vlaneseq
      %v543 = vshrl.u32 %v542, 7
      %v544 = vsub.s32 0, %v543
      %v545 = vrot.slane %v522, %v544
      %v546 = vlaneseq
      %v547 = vshrl.u32 %v546, 7
      %v548 = vsub.s32 0, %v547
      %v549 = vrot.slane %v523, %v548
      %v550 = vmul.f32 %v541, %v545
      %v551 = vmul.f32 %v540, %v549
      %553 = vset.pattern.permute.xlu0 0
      %554 = vperm.xlu0 %553, %v527
      %v555 = vpop.permute.xlu0 %554
      %v557 = vmul.f32 %v550, %v555
      %v558 = vmul.f32 %v551, %v555
      %v559 = vadd.f32 %v557, 0.0
      %v560 = vadd.f32 %v558, 0.0
      %561 = vrot.lane.b32.xlu0 %v526, 16
      %v562 = vpop.permute.xlu0 %561
      %563 = vrot.lane.b32.xlu0 %v531, 16
      %v564 = vpop.permute.xlu0 %563
      %vm565 = vcmp.lt.s32.totalorder %v538, 16
      %v566 = vsel %vm565, %v562, %v564
      %v567 = vsel %vm565, %v564, %v562
      %v568 = vlaneseq
      %v569 = vshrl.u32 %v568, 7
      %v570 = vsub.s32 1, %v569
      %v571 = vrot.slane %v522, %v570
      %v572 = vlaneseq
      %v573 = vshrl.u32 %v572, 7
      %v574 = vsub.s32 1, %v573
      %v575 = vrot.slane %v523, %v574
      %v576 = vmul.f32 %v567, %v571
      %v577 = vmul.f32 %v566, %v575
      %578 = vset.pattern.permute.xlu0 1
      %579 = vperm.xlu0 %578, %v527
      %v580 = vpop.permute.xlu0 %579
      %v582 = vmul.f32 %v576, %v580
      %v583 = vmul.f32 %v577, %v580
      %v584 = vadd.f32 %v559, %v582
      %v585 = vadd.f32 %v560, %v583
      %586 = vrot.lane.b32.xlu0 %v526, 15
      %v587 = vpop.permute.xlu0 %586
      %588 = vrot.lane.b32.xlu0 %v531, 15
      %v589 = vpop.permute.xlu0 %588
      %vm590 = vcmp.lt.s32.totalorder %v538, 15
      %v591 = vsel %vm590, %v587, %v589
      %v592 = vsel %vm590, %v589, %v587
      %v593 = vlaneseq
      %v594 = vshrl.u32 %v593, 7
      %v595 = vsub.s32 2, %v594
      %v596 = vrot.slane %v522, %v595
      %v597 = vlaneseq
      %v598 = vshrl.u32 %v597, 7
      %v599 = vsub.s32 2, %v598
      %v600 = vrot.slane %v523, %v599
      %v601 = vmul.f32 %v592, %v596
      %v602 = vmul.f32 %v591, %v600
      %603 = vset.pattern.permute.xlu0 2
      %604 = vperm.xlu0 %603, %v527
      %v605 = vpop.permute.xlu0 %604
      %v607 = vmul.f32 %v601, %v605
      %v608 = vmul.f32 %v602, %v605
      %v609 = vadd.f32 %v584, %v607
      %v610 = vadd.f32 %v585, %v608
      %611 = vrot.lane.b32.xlu0 %v526, 1
      %v612 = vpop.permute.xlu0 %611
      %613 = vrot.lane.b32.xlu0 %v531, 1
      %v614 = vpop.permute.xlu0 %613
      %vm615 = vcmp.lt.s32.totalorder %v538, 1
      %v616 = vsel %vm615, %v612, %v614
      %v617 = vsel %vm615, %v614, %v612
      %v618 = vlaneseq
      %v619 = vshrl.u32 %v618, 7
      %v620 = vsub.s32 3, %v619
      %v621 = vrot.slane %v522, %v620
      %v622 = vlaneseq
      %v623 = vshrl.u32 %v622, 7
      %v624 = vsub.s32 3, %v623
      %v625 = vrot.slane %v523, %v624
      %v626 = vmul.f32 %v617, %v621
      %v627 = vmul.f32 %v616, %v625
      %628 = vset.pattern.permute.xlu0 3
      %629 = vperm.xlu0 %628, %v527
      %v630 = vpop.permute.xlu0 %629
      %v632 = vmul.f32 %v626, %v630
      %v633 = vmul.f32 %v627, %v630
      %v634 = vadd.f32 %v609, %v632
      %v635 = vadd.f32 %v610, %v633
      %636 = vset.pattern.permute.xlu0 4
      %637 = vperm.xlu0 %636, %v527
      %v638 = vpop.permute.xlu0 %637
      %v640 = vunpack.c.l.s4 839922192
      %v641 = vunpack.c.0.s8 %v640
      %v642 = vlaneseq
      %v643 = vshrl.u32 %v642, 7
      %v644 = vsub.s32 %v641, %v643
      %v645 = vrot.slane %v638, %v644
      %v647 = vmul.f32 %v526, %v645
      %v649 = vcombine.high %v647, %v647
      %v651 = vadd.f32 %v634, %v647
      %v652 = vadd.f32 %v635, %v649
      %653 = vrot.lane.b32.xlu0 %v526, 127
      %v654 = vpop.permute.xlu0 %653
      %655 = vrot.lane.b32.xlu0 %v531, 127
      %v656 = vpop.permute.xlu0 %655
      %vm657 = vcmp.lt.s32.totalorder %v538, 127
      %v658 = vsel %vm657, %v654, %v656
      %v659 = vsel %vm657, %v656, %v654
      %v660 = vlaneseq
      %v661 = vshrl.u32 %v660, 7
      %v662 = vsub.s32 5, %v661
      %v663 = vrot.slane %v522, %v662
      %v664 = vlaneseq
      %v665 = vshrl.u32 %v664, 7
      %v666 = vsub.s32 5, %v665
      %v667 = vrot.slane %v523, %v666
      %v668 = vmul.f32 %v658, %v663
      %v669 = vmul.f32 %v659, %v667
      %670 = vset.pattern.permute.xlu0 5
      %671 = vperm.xlu0 %670, %v527
      %v672 = vpop.permute.xlu0 %671
      %v674 = vmul.f32 %v668, %v672
      %v675 = vmul.f32 %v669, %v672
      %v676 = vadd.f32 %v651, %v674
      %v677 = vadd.f32 %v652, %v675
      %678 = vrot.lane.b32.xlu0 %v526, 113
      %v679 = vpop.permute.xlu0 %678
      %680 = vrot.lane.b32.xlu0 %v531, 113
      %v681 = vpop.permute.xlu0 %680
      %vm682 = vcmp.lt.s32.totalorder %v538, 113
      %v683 = vsel %vm682, %v679, %v681
      %v684 = vsel %vm682, %v681, %v679
      %v685 = vlaneseq
      %v686 = vshrl.u32 %v685, 7
      %v687 = vsub.s32 6, %v686
      %v688 = vrot.slane %v522, %v687
      %v689 = vlaneseq
      %v690 = vshrl.u32 %v689, 7
      %v691 = vsub.s32 6, %v690
      %v692 = vrot.slane %v523, %v691
      %v693 = vmul.f32 %v683, %v688
      %v694 = vmul.f32 %v684, %v692
      %695 = vset.pattern.permute.xlu0 6
      %696 = vperm.xlu0 %695, %v527
      %v697 = vpop.permute.xlu0 %696
      %v699 = vmul.f32 %v693, %v697
      %v700 = vmul.f32 %v694, %v697
      %v701 = vadd.f32 %v676, %v699
      %v702 = vadd.f32 %v677, %v700
      %703 = vrot.lane.b32.xlu0 %v526, 112
      %v704 = vpop.permute.xlu0 %703
      %705 = vrot.lane.b32.xlu0 %v531, 112
      %v706 = vpop.permute.xlu0 %705
      %vm707 = vcmp.lt.s32.totalorder %v538, 112
      %v708 = vsel %vm707, %v704, %v706
      %v709 = vsel %vm707, %v706, %v704
      %v710 = vlaneseq
      %v711 = vshrl.u32 %v710, 7
      %v712 = vsub.s32 7, %v711
      %v713 = vrot.slane %v522, %v712
      %v714 = vlaneseq
      %v715 = vshrl.u32 %v714, 7
      %v716 = vsub.s32 7, %v715
      %v717 = vrot.slane %v523, %v716
      %v718 = vmul.f32 %v708, %v713
      %v719 = vmul.f32 %v709, %v717
      %720 = vset.pattern.permute.xlu0 7
      %721 = vperm.xlu0 %720, %v527
      %v722 = vpop.permute.xlu0 %721
      %v724 = vmul.f32 %v718, %v722
      %v725 = vmul.f32 %v719, %v722
      %v726 = vadd.f32 %v701, %v724
      %v727 = vadd.f32 %v702, %v725
      %728 = vrot.lane.b32.xlu0 %v526, 111
      %v729 = vpop.permute.xlu0 %728
      %730 = vrot.lane.b32.xlu0 %v531, 111
      %v731 = vpop.permute.xlu0 %730
      %vm732 = vcmp.lt.s32.totalorder %v538, 111
      %v733 = vsel %vm732, %v729, %v731
      %v734 = vsel %vm732, %v731, %v729
      %v735 = vlaneseq
      %v736 = vshrl.u32 %v735, 7
      %v737 = vsub.s32 0, %v736
      %v738 = vrot.slane %v524, %v737
      %v739 = vlaneseq
      %v740 = vshrl.u32 %v739, 7
      %v741 = vsub.s32 0, %v740
      %v742 = vrot.slane %v525, %v741
      %v743 = vmul.f32 %v733, %v738
      %v744 = vmul.f32 %v734, %v742
      %745 = vset.pattern.permute.xlu0 8
      %746 = vperm.xlu0 %745, %v527
      %v747 = vpop.permute.xlu0 %746
      %v749 = vmul.f32 %v743, %v747
      %v750 = vmul.f32 %v744, %v747
      %v751 = vadd.f32 %v726, %v749
      %v752 = vadd.f32 %v727, %v750
      %754 = vset.pattern.permute.xlu0 0
      %755 = vperm.xlu0 %754, %v528
      %v756 = vpop.permute.xlu0 %755
      %v758 = vmul.f32 %v751, %v756
      %v759 = vmul.f32 %v752, %v756
      %761 = vset.pattern.permute.xlu0 0
      %762 = vperm.xlu0 %761, %v529
      %v763 = vpop.permute.xlu0 %762
      %v765 = vadd.f32 %v758, %v763
      %v766 = vadd.f32 %v759, %v763
      %v767 = vmax.f32 %v765, 0.0
      %v768 = vmax.f32 %v766, 0.0
      %v769 = vld [vmem:[%s5] sm:$0xf]
      %v770 = vlaneseq
      %v771 = vshrl.u32 %v770, 7
      %v772 = vsub.s32 0, %v771
      %v773 = vrot.slane %v767, %v772
      %v774 = vlaneseq
      %v775 = vshrl.u32 %v774, 7
      %v776 = vsub.s32 0, %v775
      %v777 = vrot.slane %v768, %v776
      %779 = vset.pattern.permute.xlu0 0
      %780 = vperm.xlu0 %779, %v769
      %v781 = vpop.permute.xlu0 %780
      %v783 = vmul.f32 %v773, %v781
      %v784 = vmul.f32 %v777, %v781
      %v785 = vadd.f32 %v783, 0.0
      %v786 = vadd.f32 %v784, 0.0
      %v787 = vlaneseq
      %v788 = vshrl.u32 %v787, 7
      %v789 = vsub.s32 1, %v788
      %v790 = vrot.slane %v767, %v789
      %v791 = vlaneseq
      %v792 = vshrl.u32 %v791, 7
      %v793 = vsub.s32 1, %v792
      %v794 = vrot.slane %v768, %v793
      %795 = vset.pattern.permute.xlu0 1
      %796 = vperm.xlu0 %795, %v769
      %v797 = vpop.permute.xlu0 %796
      %v799 = vmul.f32 %v790, %v797
      %v800 = vmul.f32 %v794, %v797
      %v801 = vadd.f32 %v785, %v799
      %v802 = vadd.f32 %v786, %v800
      %v803 = vlaneseq
      %v804 = vshrl.u32 %v803, 7
      %v805 = vsub.s32 2, %v804
      %v806 = vrot.slane %v767, %v805
      %v807 = vlaneseq
      %v808 = vshrl.u32 %v807, 7
      %v809 = vsub.s32 2, %v808
      %v810 = vrot.slane %v768, %v809
      %811 = vset.pattern.permute.xlu0 2
      %812 = vperm.xlu0 %811, %v769
      %v813 = vpop.permute.xlu0 %812
      %v815 = vmul.f32 %v806, %v813
      %v816 = vmul.f32 %v810, %v813
      %v817 = vadd.f32 %v801, %v815
      %v818 = vadd.f32 %v802, %v816
      %v819 = vlaneseq
      %v820 = vshrl.u32 %v819, 7
      %v821 = vsub.s32 3, %v820
      %v822 = vrot.slane %v767, %v821
      %v823 = vlaneseq
      %v824 = vshrl.u32 %v823, 7
      %v825 = vsub.s32 3, %v824
      %v826 = vrot.slane %v768, %v825
      %827 = vset.pattern.permute.xlu0 3
      %828 = vperm.xlu0 %827, %v769
      %v829 = vpop.permute.xlu0 %828
      %v831 = vmul.f32 %v822, %v829
      %v832 = vmul.f32 %v826, %v829
      %v833 = vadd.f32 %v817, %v831
      %v834 = vadd.f32 %v818, %v832
      %v835 = vld [vmem:[%s6] sm:$0xf]
      %837 = vset.pattern.permute.xlu0 0
      %838 = vperm.xlu0 %837, %v835
      %v839 = vpop.permute.xlu0 %838
      %v841 = vmul.f32 %v833, %v839
      %v842 = vmul.f32 %v834, %v839
      %v843 = vld [vmem:[%s7] sm:$0xf]
      %845 = vset.pattern.permute.xlu0 0
      %846 = vperm.xlu0 %845, %v843
      %v847 = vpop.permute.xlu0 %846
      %v849 = vadd.f32 %v841, %v847
      %v850 = vadd.f32 %v842, %v847
      %v851 = vmax.f32 %v849, 0.0
      %v852 = vmax.f32 %v850, 0.0
      %v853 = vld [vmem:[%s8] sm:$0xf]
      %v854 = vld [vmem:[%s9] sm:$0xf]
      %v855 = vld [vmem:[%s10] sm:$0xf]
      %856 = vrot.lane.b32.xlu0 %v851, 17
      %v857 = vpop.permute.xlu0 %856
      %858 = vrot.lane.b32.xlu0 %v852, 17
      %v859 = vpop.permute.xlu0 %858
      %v860 = vsel %vm539, %v857, %v859
      %v861 = vsel %vm539, %v859, %v857
      %v862 = vmul.f32 %v861, %v545
      %v863 = vmul.f32 %v860, %v549
      %865 = vset.pattern.permute.xlu0 0
      %866 = vperm.xlu0 %865, %v853
      %v867 = vpop.permute.xlu0 %866
      %v869 = vmul.f32 %v862, %v867
      %v870 = vmul.f32 %v863, %v867
      %v871 = vadd.f32 %v869, 0.0
      %v872 = vadd.f32 %v870, 0.0
      %873 = vrot.lane.b32.xlu0 %v851, 16
      %v874 = vpop.permute.xlu0 %873
      %875 = vrot.lane.b32.xlu0 %v852, 16
      %v876 = vpop.permute.xlu0 %875
      %v877 = vsel %vm565, %v874, %v876
      %v878 = vsel %vm565, %v876, %v874
      %v879 = vmul.f32 %v878, %v571
      %v880 = vmul.f32 %v877, %v575
      %881 = vset.pattern.permute.xlu0 1
      %882 = vperm.xlu0 %881, %v853
      %v883 = vpop.permute.xlu0 %882
      %v885 = vmul.f32 %v879, %v883
      %v886 = vmul.f32 %v880, %v883
      %v887 = vadd.f32 %v871, %v885
      %v888 = vadd.f32 %v872, %v886
      %889 = vrot.lane.b32.xlu0 %v851, 15
      %v890 = vpop.permute.xlu0 %889
      %891 = vrot.lane.b32.xlu0 %v852, 15
      %v892 = vpop.permute.xlu0 %891
      %v893 = vsel %vm590, %v890, %v892
      %v894 = vsel %vm590, %v892, %v890
      %v895 = vmul.f32 %v894, %v596
      %v896 = vmul.f32 %v893, %v600
      %897 = vset.pattern.permute.xlu0 2
      %898 = vperm.xlu0 %897, %v853
      %v899 = vpop.permute.xlu0 %898
      %v901 = vmul.f32 %v895, %v899
      %v902 = vmul.f32 %v896, %v899
      %v903 = vadd.f32 %v887, %v901
      %v904 = vadd.f32 %v888, %v902
      %905 = vrot.lane.b32.xlu0 %v851, 1
      %v906 = vpop.permute.xlu0 %905
      %907 = vrot.lane.b32.xlu0 %v852, 1
      %v908 = vpop.permute.xlu0 %907
      %v909 = vsel %vm615, %v906, %v908
      %v910 = vsel %vm615, %v908, %v906
      %v911 = vmul.f32 %v910, %v621
      %v912 = vmul.f32 %v909, %v625
      %913 = vset.pattern.permute.xlu0 3
      %914 = vperm.xlu0 %913, %v853
      %v915 = vpop.permute.xlu0 %914
      %v917 = vmul.f32 %v911, %v915
      %v918 = vmul.f32 %v912, %v915
      %v919 = vadd.f32 %v903, %v917
      %v920 = vadd.f32 %v904, %v918
      %921 = vset.pattern.permute.xlu0 4
      %922 = vperm.xlu0 %921, %v853
      %v923 = vpop.permute.xlu0 %922
      %v925 = vmul.f32 %v851, %v923
      %v926 = vmul.f32 %v852, %v923
      %v927 = vadd.f32 %v919, %v925
      %v928 = vadd.f32 %v920, %v926
      %929 = vrot.lane.b32.xlu0 %v851, 127
      %v930 = vpop.permute.xlu0 %929
      %931 = vrot.lane.b32.xlu0 %v852, 127
      %v932 = vpop.permute.xlu0 %931
      %v933 = vsel %vm657, %v930, %v932
      %v934 = vsel %vm657, %v932, %v930
      %v935 = vmul.f32 %v933, %v663
      %v936 = vmul.f32 %v934, %v667
      %937 = vset.pattern.permute.xlu0 5
      %938 = vperm.xlu0 %937, %v853
      %v939 = vpop.permute.xlu0 %938
      %v941 = vmul.f32 %v935, %v939
      %v942 = vmul.f32 %v936, %v939
      %v943 = vadd.f32 %v927, %v941
      %v944 = vadd.f32 %v928, %v942
      %945 = vrot.lane.b32.xlu0 %v851, 113
      %v946 = vpop.permute.xlu0 %945
      %947 = vrot.lane.b32.xlu0 %v852, 113
      %v948 = vpop.permute.xlu0 %947
      %v949 = vsel %vm682, %v946, %v948
      %v950 = vsel %vm682, %v948, %v946
      %v951 = vmul.f32 %v949, %v688
      %v952 = vmul.f32 %v950, %v692
      %953 = vset.pattern.permute.xlu0 6
      %954 = vperm.xlu0 %953, %v853
      %v955 = vpop.permute.xlu0 %954
      %v957 = vmul.f32 %v951, %v955
      %v958 = vmul.f32 %v952, %v955
      %v959 = vadd.f32 %v943, %v957
      %v960 = vadd.f32 %v944, %v958
      %961 = vrot.lane.b32.xlu0 %v851, 112
      %v962 = vpop.permute.xlu0 %961
      %963 = vrot.lane.b32.xlu0 %v852, 112
      %v964 = vpop.permute.xlu0 %963
      %v965 = vsel %vm707, %v962, %v964
      %v966 = vsel %vm707, %v964, %v962
      %v967 = vmul.f32 %v965, %v713
      %v968 = vmul.f32 %v966, %v717
      %969 = vset.pattern.permute.xlu0 7
      %970 = vperm.xlu0 %969, %v853
      %v971 = vpop.permute.xlu0 %970
      %v973 = vmul.f32 %v967, %v971
      %v974 = vmul.f32 %v968, %v971
      %v975 = vadd.f32 %v959, %v973
      %v976 = vadd.f32 %v960, %v974
      %977 = vrot.lane.b32.xlu0 %v851, 111
      %v978 = vpop.permute.xlu0 %977
      %979 = vrot.lane.b32.xlu0 %v852, 111
      %v980 = vpop.permute.xlu0 %979
      %v981 = vsel %vm732, %v978, %v980
      %v982 = vsel %vm732, %v980, %v978
      %v983 = vmul.f32 %v981, %v738
      %v984 = vmul.f32 %v982, %v742
      %985 = vset.pattern.permute.xlu0 8
      %986 = vperm.xlu0 %985, %v853
      %v987 = vpop.permute.xlu0 %986
      %v989 = vmul.f32 %v983, %v987
      %v990 = vmul.f32 %v984, %v987
      %v991 = vadd.f32 %v975, %v989
      %v992 = vadd.f32 %v976, %v990
      %994 = vset.pattern.permute.xlu0 0
      %995 = vperm.xlu0 %994, %v854
      %v996 = vpop.permute.xlu0 %995
      %v998 = vmul.f32 %v991, %v996
      %v999 = vmul.f32 %v992, %v996
      %1001 = vset.pattern.permute.xlu0 0
      %1002 = vperm.xlu0 %1001, %v855
      %v1003 = vpop.permute.xlu0 %1002
      %v1005 = vadd.f32 %v998, %v1003
      %v1006 = vadd.f32 %v999, %v1003
      %v1007 = vmax.f32 %v1005, 0.0
      %v1008 = vmax.f32 %v1006, 0.0
      %v1009 = vld [vmem:[%s11] sm:$0xf]
      %v1010 = vlaneseq
      %v1011 = vshrl.u32 %v1010, 7
      %v1012 = vsub.s32 0, %v1011
      %v1013 = vrot.slane %v1007, %v1012
      %v1014 = vlaneseq
      %v1015 = vshrl.u32 %v1014, 7
      %v1016 = vsub.s32 0, %v1015
      %v1017 = vrot.slane %v1008, %v1016
      %1019 = vset.pattern.permute.xlu0 0
      %1020 = vperm.xlu0 %1019, %v1009
      %v1021 = vpop.permute.xlu0 %1020
      %v1023 = vmul.f32 %v1013, %v1021
      %v1024 = vmul.f32 %v1017, %v1021
      %v1025 = vadd.f32 %v1023, 0.0
      %v1026 = vadd.f32 %v1024, 0.0
      %v1027 = vlaneseq
      %v1028 = vshrl.u32 %v1027, 7
      %v1029 = vsub.s32 1, %v1028
      %v1030 = vrot.slane %v1007, %v1029
      %v1031 = vlaneseq
      %v1032 = vshrl.u32 %v1031, 7
      %v1033 = vsub.s32 1, %v1032
      %v1034 = vrot.slane %v1008, %v1033
      %1035 = vset.pattern.permute.xlu0 1
      %1036 = vperm.xlu0 %1035, %v1009
      %v1037 = vpop.permute.xlu0 %1036
      %v1039 = vmul.f32 %v1030, %v1037
      %v1040 = vmul.f32 %v1034, %v1037
      %v1041 = vadd.f32 %v1025, %v1039
      %v1042 = vadd.f32 %v1026, %v1040
      %v1043 = vlaneseq
      %v1044 = vshrl.u32 %v1043, 7
      %v1045 = vsub.s32 2, %v1044
      %v1046 = vrot.slane %v1007, %v1045
      %v1047 = vlaneseq
      %v1048 = vshrl.u32 %v1047, 7
      %v1049 = vsub.s32 2, %v1048
      %v1050 = vrot.slane %v1008, %v1049
      %1051 = vset.pattern.permute.xlu0 2
      %1052 = vperm.xlu0 %1051, %v1009
      %v1053 = vpop.permute.xlu0 %1052
      %v1055 = vmul.f32 %v1046, %v1053
      %v1056 = vmul.f32 %v1050, %v1053
      %v1057 = vadd.f32 %v1041, %v1055
      %v1058 = vadd.f32 %v1042, %v1056
      %v1059 = vlaneseq
      %v1060 = vshrl.u32 %v1059, 7
      %v1061 = vsub.s32 3, %v1060
      %v1062 = vrot.slane %v1007, %v1061
      %v1063 = vlaneseq
      %v1064 = vshrl.u32 %v1063, 7
      %v1065 = vsub.s32 3, %v1064
      %v1066 = vrot.slane %v1008, %v1065
      %1067 = vset.pattern.permute.xlu0 3
      %1068 = vperm.xlu0 %1067, %v1009
      %v1069 = vpop.permute.xlu0 %1068
      %v1071 = vmul.f32 %v1062, %v1069
      %v1072 = vmul.f32 %v1066, %v1069
      %v1073 = vadd.f32 %v1057, %v1071
      %v1074 = vadd.f32 %v1058, %v1072
      %v1075 = vld [vmem:[%s12] sm:$0xf]
      %1077 = vset.pattern.permute.xlu0 0
      %1078 = vperm.xlu0 %1077, %v1075
      %v1079 = vpop.permute.xlu0 %1078
      %v1081 = vmul.f32 %v1073, %v1079
      %v1082 = vmul.f32 %v1074, %v1079
      %v1083 = vld [vmem:[%s13] sm:$0xf]
      %1085 = vset.pattern.permute.xlu0 0
      %1086 = vperm.xlu0 %1085, %v1083
      %v1087 = vpop.permute.xlu0 %1086
      %v1089 = vadd.f32 %v1081, %v1087
      %v1090 = vadd.f32 %v1082, %v1087
      %v1091 = vmax.f32 %v1089, 0.0
      %v1092 = vmax.f32 %v1090, 0.0
      %v1093 = vld [vmem:[%s14] sm:$0xff]
      %v1094 = vlaneseq
      %v1095 = vshrl.u32 %v1094, 7
      %v1096 = vsub.s32 0, %v1095
      %v1097 = vrot.slane %v1091, %v1096
      %v1098 = vlaneseq
      %v1099 = vshrl.u32 %v1098, 7
      %v1100 = vsub.s32 0, %v1099
      %v1101 = vrot.slane %v1092, %v1100
      %1103 = vset.pattern.permute.xlu0 0
      %1104 = vperm.xlu0 %1103, %v1093
      %v1105 = vpop.permute.xlu0 %1104
      %v1107 = vmul.f32 %v1097, %v1105
      %v1108 = vmul.f32 %v1101, %v1105
      %v1109 = vadd.f32 %v1107, 0.0
      %v1110 = vadd.f32 %v1108, 0.0
      %v1111 = vlaneseq
      %v1112 = vshrl.u32 %v1111, 7
      %v1113 = vsub.s32 1, %v1112
      %v1114 = vrot.slane %v1091, %v1113
      %v1115 = vlaneseq
      %v1116 = vshrl.u32 %v1115, 7
      %v1117 = vsub.s32 1, %v1116
      %v1118 = vrot.slane %v1092, %v1117
      %1119 = vset.pattern.permute.xlu0 1
      %1120 = vperm.xlu0 %1119, %v1093
      %v1121 = vpop.permute.xlu0 %1120
      %v1123 = vmul.f32 %v1114, %v1121
      %v1124 = vmul.f32 %v1118, %v1121
      %v1125 = vadd.f32 %v1109, %v1123
      %v1126 = vadd.f32 %v1110, %v1124
      %v1127 = vlaneseq
      %v1128 = vshrl.u32 %v1127, 7
      %v1129 = vsub.s32 2, %v1128
      %v1130 = vrot.slane %v1091, %v1129
      %v1131 = vlaneseq
      %v1132 = vshrl.u32 %v1131, 7
      %v1133 = vsub.s32 2, %v1132
      %v1134 = vrot.slane %v1092, %v1133
      %1135 = vset.pattern.permute.xlu0 2
      %1136 = vperm.xlu0 %1135, %v1093
      %v1137 = vpop.permute.xlu0 %1136
      %v1139 = vmul.f32 %v1130, %v1137
      %v1140 = vmul.f32 %v1134, %v1137
      %v1141 = vadd.f32 %v1125, %v1139
      %v1142 = vadd.f32 %v1126, %v1140
      %v1143 = vlaneseq
      %v1144 = vshrl.u32 %v1143, 7
      %v1145 = vsub.s32 3, %v1144
      %v1146 = vrot.slane %v1091, %v1145
      %v1147 = vlaneseq
      %v1148 = vshrl.u32 %v1147, 7
      %v1149 = vsub.s32 3, %v1148
      %v1150 = vrot.slane %v1092, %v1149
      %1151 = vset.pattern.permute.xlu0 3
      %1152 = vperm.xlu0 %1151, %v1093
      %v1153 = vpop.permute.xlu0 %1152
      %v1155 = vmul.f32 %v1146, %v1153
      %v1156 = vmul.f32 %v1150, %v1153
      %v1157 = vadd.f32 %v1141, %v1155
      %v1158 = vadd.f32 %v1142, %v1156
      %v1159 = vld [vmem:[%s15] sm:$0xff]
      %1161 = vset.pattern.permute.xlu0 0
      %1162 = vperm.xlu0 %1161, %v1159
      %v1163 = vpop.permute.xlu0 %1162
      %v1165 = vadd.f32 %v1157, %v1163
      %v1166 = vadd.f32 %v1158, %v1163
      %1167 = vst [vmem:[%s521] sm:$0xff] %v1165
      %1168 = vst [vmem:[%s521 + $0x8] sm:$0xff] %v1166
      %p1169 = scmp.lt.s32.totalorder %s27, 1
      %s1170 = scalar_select %p1169, %s27, 1
      %s1171 = smul.addr %s1170, 2
      %s1172 = smul.addr %s1171, 8
      %s1173 = scalar_lea.vmem %s16, %s1172
      // Predicated region
      $region85: #{classifier_forward.1} parent=83 // pred_check
        %p1174 = pneg %p386
      $region86: #{classifier_forward.1} parent=83 // pred_check_branch
        %1176 = sbr.rel (%p1174) target = $region88
      $region87: #{classifier_forward.1} parent=83 // pred_region
        _
      $region88: #{classifier_forward.1} parent=83 // pred_fallthru
        _
    $region84: #{classifier_forward.1} parent=5 // pred_fallthru
      _
    %p1177 = scmp.le.s32.totalorder 2, %s22
    // Predicated region
    $region89: #{classifier_forward.1} parent=5 // pred_check
      %p1178 = pneg %p1177
    $region90: #{classifier_forward.1} parent=5 // pred_check_branch
      %1180 = sbr.rel (%p1178) target = $region92
    $region91: #{classifier_forward.1} parent=5 // pred_region
      %s1181 = ssub.s32 %s22, 2
      // Predicated region
      $region93: #{classifier_forward.1} parent=91 // pred_check
        %p1182 = pneg %p392
      $region94: #{classifier_forward.1} parent=91 // pred_check_branch
        %1184 = sbr.rel (%p1182) target = $region96
      $region95: #{classifier_forward.1} parent=91 // pred_region
        %p1185 = scmp.lt.s32.totalorder %s28, 1
        %s1186 = scalar_select %p1185, %s28, 1
        %s1187 = smul.addr %s1186, 2
        %s1188 = smul.addr %s1187, 8
        %s1189 = scalar_lea.vmem %s16, %s1188
      $region96: #{classifier_forward.1} parent=91 // pred_fallthru
        _
    $region92: #{classifier_forward.1} parent=5 // pred_fallthru
      _
  $region6: #{classifier_forward.1} parent=0 // loop_footer
    %s26 = sadd.s32 1, %s22
  $region7: #{classifier_forward.1} parent=0 // loop_footer_branch
    %21 = sbr.rel target = $region3
  $region8: #{classifier_forward.1} parent=0 // loop_exit
    _

</llo_original>
